<compile_context>
chip_gen: v7x
topology: tpu7x:2x2x1
jax: 0.10.0
libtpu: 0.0.40
codegen_flags: <defaults>
</compile_context>

<pallas_src>
import functools

import jax
import jax.numpy as jnp
from jax import lax
from jax.experimental import pallas as pl
from jax.experimental.pallas import tpu as pltpu

PAD = 4  # max conv padding = largest Haar kernel (8) // 2

# RGB -> YIQ matrix (piqa.utils.color), deterministic parameter defined in-script.
RGB_TO_YIQ = jnp.array(
    [[0.299, 0.587, 0.114],
     [0.5959, -0.2746, -0.3213],
     [0.2115, -0.5227, 0.3112]], dtype=jnp.float32)


def _round_up(v, m):
    return -(-v // m) * m


# ---------------------------------------------------------------------------
# Pallas kernel: one (batch, row-stripe) pair per grid step
# ---------------------------------------------------------------------------
def _haarpsi_kernel(x_hbm, y_hbm, out_ref, xrgb, yrgb, xlum, ylum, sem, *,
                    ts, h, w, wp, c, alpha):
    """x_hbm/y_hbm: (N, 3, hp, wp) zero-padded pooled RGB in HBM (pl.ANY).
    xrgb/yrgb: (3, ts+8, wp) VMEM stripe scratch.  xlum/ylum: (ts+8, wp) luma
    scratch.  out_ref: (1, 1, 2, 128) per-(batch, stripe) partial (num, den).
    """
    tsp = ts + 2 * PAD
    b = pl.program_id(0)
    s = pl.program_id(1)
    # padded-row DMA offset == global output-row offset of this stripe
    r0 = pl.multiple_of(s * ts, 8)

    # --- DMA the padded RGB stripe (includes the 4-row halo on each side) ----
    cx = pltpu.make_async_copy(x_hbm.at[b, :, pl.ds(r0, tsp), :], xrgb, sem.at[0])
    cy = pltpu.make_async_copy(y_hbm.at[b, :, pl.ds(r0, tsp), :], yrgb, sem.at[1])
    cx.start()
    cy.start()
    cx.wait()
    cy.wait()

    # --- luma of the padded stripe (zero padding stays zero: no re-zeroing) --
    xlum[...] = 0.299 * xrgb[0] + 0.587 * xrgb[1] + 0.114 * xrgb[2]
    ylum[...] = 0.299 * yrgb[0] + 0.587 * yrgb[1] + 0.114 * yrgb[2]

    def sim(a, bb):
        nu = 2.0 * a * bb + c
        de = a * a + bb * bb + c
        r = pl.reciprocal(de, approx=True)   # EUP slot
        r = r * (2.0 - de * r)               # one Newton step (keeps 2e-4 check)
        return nu * r

    def sigmoid(z):
        return 0.5 * (jnp.tanh(0.5 * z) + 1.0)   # single EUP op, no divide

    def grads(rh, cv, k):
        """|Haar gradients| at scale k from rectangular box sums.

        rh = RECT_{k x k/2}, cv = RECT_{k/2 x k}, indexed by the padded-plane
        coordinate of their top-left corner.  Reproduces
        F.conv2d(y, gradient_kernel(haar_kernel(k)), padding=k//2)[..., 1:, 1:].
        """
        off = 5 - k // 2
        half = k // 2
        inv = 1.0 / k
        g_h = (rh[off:off + ts, off:off + w]
               - rh[off:off + ts, off + half:off + half + w])
        g_v = (cv[off:off + ts, off:off + w]
               - cv[off + half:off + half + ts, off:off + w])
        return jnp.abs(inv * g_h), jnp.abs(inv * g_v)

    # --- hierarchical rectangular box sums shared across the three scales ----
    # First level reads offset windows straight from the luma scratch refs.
    r21x = xlum[0:tsp - 1, :] + xlum[1:tsp, :]
    c12x = xlum[:, 0:wp - 1] + xlum[:, 1:wp]
    r21y = ylum[0:tsp - 1, :] + ylum[1:tsp, :]
    c12y = ylum[:, 0:wp - 1] + ylum[:, 1:wp]
    # scale 2
    gxh, gxv = grads(r21x, c12x, 2)
    gyh, gyv = grads(r21y, c12y, 2)
    ls_h = sim(gxh, gyh)
    ls_v = sim(gxv, gyv)
    # 2x2 box sums via sublane-shifted adds of the column-pair sums (keeps
    # these particular shifts off the XLU's lane-rotate path).
    b22x = c12x[:-1, :] + c12x[1:, :]
    b22y = c12y[:-1, :] + c12y[1:, :]
    # scale 4
    r42x = b22x[:-2, :] + b22x[2:, :]
    c24x = b22x[:, :-2] + b22x[:, 2:]
    r42y = b22y[:-2, :] + b22y[2:, :]
    c24y = b22y[:, :-2] + b22y[:, 2:]
    gxh, gxv = grads(r42x, c24x, 4)
    gyh, gyv = grads(r42y, c24y, 4)
    ls_h = 0.5 * (ls_h + sim(gxh, gyh))
    ls_v = 0.5 * (ls_v + sim(gxv, gyv))
    b44x = c24x[:-2, :] + c24x[2:, :]
    b44y = c24y[:-2, :] + c24y[2:, :]
    # scale 8 -> weights
    r84x = b44x[:-4, :] + b44x[4:, :]
    c48x = b44x[:, :-4] + b44x[:, 4:]
    r84y = b44y[:-4, :] + b44y[4:, :]
    c48y = b44y[:, :-4] + b44y[:, 4:]
    gxh, gxv = grads(r84x, c48x, 8)
    gyh, gyv = grads(r84y, c48y, 8)
    w_h = jnp.maximum(gxh, gyh)
    w_v = jnp.maximum(gxv, gyv)

    # Rows past the image bottom (last stripe / alignment rows) see real
    # boundary data through the scale-8 window, so mask them out of the sums.
    rows = lax.broadcasted_iota(jnp.int32, (ts, w), 0) + r0
    valid = rows < h
    w_h = jnp.where(valid, w_h, 0.0)
    w_v = jnp.where(valid, w_v, 0.0)
    w_c = 0.5 * (w_h + w_v)

    # --- chromatic (I, Q) similarity from a small (1-px halo) RGB window -----
    def chroma(rgb, c1, c2, c3):
        rw = rgb[0, PAD:PAD + ts + 1, PAD:PAD + w + 1]
        gw = rgb[1, PAD:PAD + ts + 1, PAD:PAD + w + 1]
        bw = rgb[2, PAD:PAD + ts + 1, PAD:PAD + w + 1]
        p = c1 * rw + c2 * gw + c3 * bw
        rs = p[:-1, :] + p[1:, :]
        return jnp.abs(0.25 * (rs[:, :-1] + rs[:, 1:]))   # 2x2 stride-1 pool

    ls_c = 0.5 * (sim(chroma(xrgb, 0.5959, -0.2746, -0.3213),
                      chroma(yrgb, 0.5959, -0.2746, -0.3213))
                  + sim(chroma(xrgb, 0.2115, -0.5227, 0.3112),
                        chroma(yrgb, 0.2115, -0.5227, 0.3112)))

    hs_h = sigmoid(alpha * ls_h)
    hs_v = sigmoid(alpha * ls_v)
    hs_c = sigmoid(alpha * ls_c)
    num = jnp.sum(hs_h * w_h + hs_v * w_v + hs_c * w_c)
    den = jnp.sum(w_h + w_v + w_c)

    out_ref[0, 0, 0:1, :] = jnp.broadcast_to(num, (1, 128))
    out_ref[0, 0, 1:2, :] = jnp.broadcast_to(den, (1, 128))


# ---------------------------------------------------------------------------
# JAX glue + pallas_call wrapper (equivalent of HaarPSI.forward)
# ---------------------------------------------------------------------------
def _avg_pool_2x2_stride2(x):
    # F.avg_pool2d(x, 2, ceil_mode=True) for even H, W.
    # TODO(synk): odd H/W (ceil_mode partial windows) not handled.
    n, ch, hh, ww = x.shape
    return x.reshape(n, ch, hh // 2, 2, ww // 2, 2).mean(axis=(3, 5))


def _rgb_to_yiq(x):
    return jnp.einsum('ji,nihw->njhw', RGB_TO_YIQ, x)


@functools.partial(jax.jit, static_argnames=('value_range', 'c', 'alpha',
                                              'reduction', 'stripe_rows'))
def haarpsi_pallas(x, y, *, value_range=1.0, c=30.0 / 255.0 ** 2, alpha=4.2,
                   reduction='mean', stripe_rows=128):
    c = float(c * value_range ** 2)
    alpha = float(alpha)
    # TODO(synk): fuse the 2x2 stride-2 pool into the kernel to drop this
    # pooled-tensor HBM round trip on bandwidth-limited v5e/v6e.
    xd = _avg_pool_2x2_stride2(x)
    yd = _avg_pool_2x2_stride2(y)
    n, _, h, w = xd.shape

    # row-stripe / alignment geometry
    ts = min(_round_up(h, 8), _round_up(stripe_rows, 8))   # output rows / stripe
    n_stripes = -(-h // ts)
    ho = n_stripes * ts
    tsp = ts + 2 * PAD
    hp = ho + 2 * PAD
    wp = _round_up(w + 2 * PAD, 128)

    # Zero-pad the pooled RGB once in HBM: 4-px conv border + stripe/lane
    # alignment.  YIQ(0,0,0) == 0, so the kernel never re-zeroes any border.
    pad_cfg = ((0, 0), (0, 0), (PAD, hp - PAD - h), (PAD, wp - PAD - w))
    xp = jnp.pad(xd, pad_cfg)
    yp = jnp.pad(yd, pad_cfg)

    kernel = functools.partial(_haarpsi_kernel, ts=ts, h=h, w=w, wp=wp,
                               c=c, alpha=alpha)
    out = pl.pallas_call(
        kernel,
        out_shape=jax.ShapeDtypeStruct((n, n_stripes, 2, 128), jnp.float32),
        grid=(n, n_stripes),
        in_specs=[pl.BlockSpec(memory_space=pl.ANY),
                  pl.BlockSpec(memory_space=pl.ANY)],
        out_specs=pl.BlockSpec((1, 1, 2, 128), lambda b, s: (b, s, 0, 0)),
        scratch_shapes=[pltpu.VMEM((3, tsp, wp), jnp.float32),
                        pltpu.VMEM((3, tsp, wp), jnp.float32),
                        pltpu.VMEM((tsp, wp), jnp.float32),
                        pltpu.VMEM((tsp, wp), jnp.float32),
                        pltpu.SemaphoreType.DMA((2,))],
        compiler_params=pltpu.CompilerParams(
            dimension_semantics=("parallel", "parallel"),
            vmem_limit_bytes=48 * 1024 * 1024),   # < v7x 64 MiB physical
    )(xp, yp)

    num = jnp.sum(out[:, :, 0, 0], axis=1)   # (N,)
    den = jnp.sum(out[:, :, 1, 0], axis=1)   # (N,)
    hpsi = num / den
    hpsi = (jnp.log(hpsi / (1.0 - hpsi)) / alpha) ** 2   # logit, in the wrapper

    if reduction == 'mean':
        return hpsi.mean()
    if reduction == 'sum':
        return hpsi.sum()
    return hpsi


# ---------------------------------------------------------------------------
# Pure-JAX reference (independent path via lax.conv) for a numerical self-check
# ---------------------------------------------------------------------------
def _haarpsi_ref(x, y, value_range=1.0, c=30.0 / 255.0 ** 2, alpha=4.2):
    c = c * value_range ** 2
    xd = _rgb_to_yiq(_avg_pool_2x2_stride2(x))
    yd = _rgb_to_yiq(_avg_pool_2x2_stride2(y))
    yx, yy = xd[:, :1], yd[:, :1]

    g_xy = []
    for j in range(1, 4):
        k = 2 ** j
        sign = jnp.concatenate([jnp.ones(k // 2), -jnp.ones(k // 2)])
        hk = jnp.outer(jnp.ones(k) / k, sign)
        kern = jnp.stack([hk, hk.T])[:, None].astype(jnp.float32)  # (2,1,k,k)
        p = k // 2

        def conv(z, kern=kern, p=p):
            o = lax.conv_general_dilated(
                z, kern, window_strides=(1, 1), padding=[(p, p), (p, p)],
                dimension_numbers=('NCHW', 'OIHW', 'NCHW'),
                precision=lax.Precision.HIGHEST)
            return jnp.abs(o[..., 1:, 1:])

        g_xy.append((conv(yx), conv(yy)))

    gs = [(2.0 * gx * gy + c) / (gx ** 2 + gy ** 2 + c) for gx, gy in g_xy[:-1]]
    ls = sum(gs) / 2.0                                   # (N,2,H,W)
    wt = jnp.maximum(g_xy[-1][0], g_xy[-1][1])           # (N,2,H,W)

    def pool(z):
        zp = jnp.pad(z, ((0, 0), (0, 0), (1, 1), (1, 1)))
        m = 0.25 * (zp[..., :-1, :-1] + zp[..., 1:, :-1]
                    + zp[..., :-1, 1:] + zp[..., 1:, 1:])
        return jnp.abs(m[..., 1:, 1:])

    m_x, m_y = pool(xd[:, 1:]), pool(yd[:, 1:])
    cs = (2.0 * m_x * m_y + c) / (m_x ** 2 + m_y ** 2 + c)
    ls = jnp.concatenate([ls, cs.mean(1, keepdims=True)], axis=1)
    wt = jnp.concatenate([wt, wt.mean(1, keepdims=True)], axis=1)
    hs = jax.nn.sigmoid(ls * alpha)
    hpsi = (hs * wt).sum((-1, -2, -3)) / wt.sum((-1, -2, -3))
    return (jnp.log(hpsi / (1.0 - hpsi)) / alpha) ** 2


if __name__ == "__main__":
    key = jax.random.PRNGKey(0)
    k1, k2, k3, k4 = jax.random.split(key, 4)

    # HaarPSI module forward with reduction='mean'
    x = jax.random.uniform(k1, (2, 3, 32, 32), dtype=jnp.float32)
    y = jax.random.uniform(k2, (2, 3, 32, 32), dtype=jnp.float32)
    loss = haarpsi_pallas(x, y, reduction='mean')
    jax.block_until_ready(loss)

    # self-check 1: per-sample values vs the pure-JAX conv reference
    got = haarpsi_pallas(x, y, reduction='none')
    ref = _haarpsi_ref(x, y)
    jax.block_until_ready((got, ref))
    assert got.shape == (2,)
    assert jnp.allclose(got, ref, rtol=2e-4, atol=2e-4), (got, ref)

    # self-check 2: non-aligned shape + multiple row stripes (stripe_rows=8)
    x2 = jax.random.uniform(k3, (1, 3, 36, 44), dtype=jnp.float32)
    y2 = jax.random.uniform(k4, (1, 3, 36, 44), dtype=jnp.float32)
    got2 = haarpsi_pallas(x2, y2, reduction='none', stripe_rows=8)
    ref2 = _haarpsi_ref(x2, y2)
    jax.block_until_ready((got2, ref2))
    assert jnp.allclose(got2, ref2, rtol=2e-4, atol=2e-4), (got2, ref2)

    print("KERNEL_OK")
</pallas_src>

<mosaic_0001>
module attributes {stable_mosaic.version = 11 : i64} {
  func.func @_haarpsi_kernel(%arg0: i32, %arg1: i32, %arg2: memref<2x3x24x128xf32, #tpu.memory_space<any>>, %arg3: memref<2x3x24x128xf32, #tpu.memory_space<any>>, %arg4: memref<1x1x2x128xf32, #tpu.memory_space<vmem>>, %arg5: memref<3x24x128xf32, #tpu.memory_space<vmem>>, %arg6: memref<3x24x128xf32, #tpu.memory_space<vmem>>, %arg7: memref<24x128xf32, #tpu.memory_space<vmem>>, %arg8: memref<24x128xf32, #tpu.memory_space<vmem>>, %arg9: memref<2x!tpu.dma_semaphore, #tpu.memory_space<semaphore_mem>>) attributes {dimension_semantics = [#tpu.dimension_semantics<parallel>, #tpu.dimension_semantics<parallel>], iteration_bounds = array<i64: 2, 1>, scalar_prefetch = 0 : i64, scratch_operands = 5 : i64, tpu.core_type = #tpu.core_type<tc>, window_params = [{}, {}, {transform_indices = @transform_2, window_bounds = array<i64: 1, 1, 2, 128>}]} {
    %c16_i32 = arith.constant 16 : i32
    %0 = arith.muli %arg1, %c16_i32 : i32
    %1 = tpu.assume_multiple %0, 8 : i32
    %c0_i32 = arith.constant 0 : i32
    %c0_i32_0 = arith.constant 0 : i32
    %c0_i32_1 = arith.constant 0 : i32
    %2 = tpu.memref_slice %arg2[%arg0, %c0_i32_0, %1, %c0_i32_1] : memref<2x3x24x128xf32, #tpu.memory_space<any>> -> memref<1x3x24x128xf32, #tpu.memory_space<any>>
    %3 = tpu.memref_squeeze %2 : memref<1x3x24x128xf32, #tpu.memory_space<any>> -> memref<3x24x128xf32, #tpu.memory_space<any>>
    %4 = tpu.memref_slice %arg9[%c0_i32] : memref<2x!tpu.dma_semaphore, #tpu.memory_space<semaphore_mem>> -> memref<1x!tpu.dma_semaphore, #tpu.memory_space<semaphore_mem>>
    %5 = tpu.memref_squeeze %4 : memref<1x!tpu.dma_semaphore, #tpu.memory_space<semaphore_mem>> -> memref<!tpu.dma_semaphore, #tpu.memory_space<semaphore_mem>>
    tpu.enqueue_dma source(%3 : memref<3x24x128xf32, #tpu.memory_space<any>>) target(%arg5 : memref<3x24x128xf32, #tpu.memory_space<vmem>>) target_semaphore(%5 : memref<!tpu.dma_semaphore, #tpu.memory_space<semaphore_mem>>)
    %c1_i32 = arith.constant 1 : i32
    %c0_i32_2 = arith.constant 0 : i32
    %c0_i32_3 = arith.constant 0 : i32
    %6 = tpu.memref_slice %arg3[%arg0, %c0_i32_2, %1, %c0_i32_3] : memref<2x3x24x128xf32, #tpu.memory_space<any>> -> memref<1x3x24x128xf32, #tpu.memory_space<any>>
    %7 = tpu.memref_squeeze %6 : memref<1x3x24x128xf32, #tpu.memory_space<any>> -> memref<3x24x128xf32, #tpu.memory_space<any>>
    %8 = tpu.memref_slice %arg9[%c1_i32] : memref<2x!tpu.dma_semaphore, #tpu.memory_space<semaphore_mem>> -> memref<1x!tpu.dma_semaphore, #tpu.memory_space<semaphore_mem>>
    %9 = tpu.memref_squeeze %8 : memref<1x!tpu.dma_semaphore, #tpu.memory_space<semaphore_mem>> -> memref<!tpu.dma_semaphore, #tpu.memory_space<semaphore_mem>>
    tpu.enqueue_dma source(%7 : memref<3x24x128xf32, #tpu.memory_space<any>>) target(%arg6 : memref<3x24x128xf32, #tpu.memory_space<vmem>>) target_semaphore(%9 : memref<!tpu.dma_semaphore, #tpu.memory_space<semaphore_mem>>)
    %c0_i32_4 = arith.constant 0 : i32
    %c0_i32_5 = arith.constant 0 : i32
    %c0_i32_6 = arith.constant 0 : i32
    %10 = tpu.memref_slice %arg2[%arg0, %c0_i32_5, %1, %c0_i32_6] : memref<2x3x24x128xf32, #tpu.memory_space<any>> -> memref<1x3x24x128xf32, #tpu.memory_space<any>>
    %11 = tpu.memref_squeeze %10 : memref<1x3x24x128xf32, #tpu.memory_space<any>> -> memref<3x24x128xf32, #tpu.memory_space<any>>
    %12 = tpu.memref_slice %arg9[%c0_i32_4] : memref<2x!tpu.dma_semaphore, #tpu.memory_space<semaphore_mem>> -> memref<1x!tpu.dma_semaphore, #tpu.memory_space<semaphore_mem>>
    %13 = tpu.memref_squeeze %12 : memref<1x!tpu.dma_semaphore, #tpu.memory_space<semaphore_mem>> -> memref<!tpu.dma_semaphore, #tpu.memory_space<semaphore_mem>>
    tpu.wait_dma2 semaphore(%13 : memref<!tpu.dma_semaphore, #tpu.memory_space<semaphore_mem>>) src(%11 : memref<3x24x128xf32, #tpu.memory_space<any>>) dst(%arg5 : memref<3x24x128xf32, #tpu.memory_space<vmem>>)
    %c1_i32_7 = arith.constant 1 : i32
    %c0_i32_8 = arith.constant 0 : i32
    %c0_i32_9 = arith.constant 0 : i32
    %14 = tpu.memref_slice %arg3[%arg0, %c0_i32_8, %1, %c0_i32_9] : memref<2x3x24x128xf32, #tpu.memory_space<any>> -> memref<1x3x24x128xf32, #tpu.memory_space<any>>
    %15 = tpu.memref_squeeze %14 : memref<1x3x24x128xf32, #tpu.memory_space<any>> -> memref<3x24x128xf32, #tpu.memory_space<any>>
    %16 = tpu.memref_slice %arg9[%c1_i32_7] : memref<2x!tpu.dma_semaphore, #tpu.memory_space<semaphore_mem>> -> memref<1x!tpu.dma_semaphore, #tpu.memory_space<semaphore_mem>>
    %17 = tpu.memref_squeeze %16 : memref<1x!tpu.dma_semaphore, #tpu.memory_space<semaphore_mem>> -> memref<!tpu.dma_semaphore, #tpu.memory_space<semaphore_mem>>
    tpu.wait_dma2 semaphore(%17 : memref<!tpu.dma_semaphore, #tpu.memory_space<semaphore_mem>>) src(%15 : memref<3x24x128xf32, #tpu.memory_space<any>>) dst(%arg6 : memref<3x24x128xf32, #tpu.memory_space<vmem>>)
    %c0 = arith.constant 0 : index
    %c0_10 = arith.constant 0 : index
    %c0_11 = arith.constant 0 : index
    %18 = vector.load %arg5[%c0, %c0_10, %c0_11] : memref<3x24x128xf32, #tpu.memory_space<vmem>>, vector<1x24x128xf32>
    %19 = vector.shape_cast %18 : vector<1x24x128xf32> to vector<24x128xf32>
    %cst = arith.constant 2.990000e-01 : f32
    %20 = vector.broadcast %cst : f32 to vector<24x128xf32>
    %21 = arith.mulf %20, %19 : vector<24x128xf32>
    %c1 = arith.constant 1 : index
    %c0_12 = arith.constant 0 : index
    %c0_13 = arith.constant 0 : index
    %22 = vector.load %arg5[%c1, %c0_12, %c0_13] : memref<3x24x128xf32, #tpu.memory_space<vmem>>, vector<1x24x128xf32>
    %23 = vector.shape_cast %22 : vector<1x24x128xf32> to vector<24x128xf32>
    %cst_14 = arith.constant 5.870000e-01 : f32
    %24 = vector.broadcast %cst_14 : f32 to vector<24x128xf32>
    %25 = arith.mulf %24, %23 : vector<24x128xf32>
    %26 = arith.addf %21, %25 : vector<24x128xf32>
    %c2 = arith.constant 2 : index
    %c0_15 = arith.constant 0 : index
    %c0_16 = arith.constant 0 : index
    %27 = vector.load %arg5[%c2, %c0_15, %c0_16] : memref<3x24x128xf32, #tpu.memory_space<vmem>>, vector<1x24x128xf32>
    %28 = vector.shape_cast %27 : vector<1x24x128xf32> to vector<24x128xf32>
    %cst_17 = arith.constant 1.140000e-01 : f32
    %29 = vector.broadcast %cst_17 : f32 to vector<24x128xf32>
    %30 = arith.mulf %29, %28 : vector<24x128xf32>
    %31 = arith.addf %26, %30 : vector<24x128xf32>
    %c0_18 = arith.constant 0 : index
    %c0_19 = arith.constant 0 : index
    %32 = vector.load %arg7[%c0_18, %c0_19] : memref<24x128xf32, #tpu.memory_space<vmem>>, vector<24x128xf32>
    tpu.vector_store %arg7[%c0_18, %c0_19], %31 {strides = array<i32>} : memref<24x128xf32, #tpu.memory_space<vmem>>, vector<24x128xf32>,
    %c0_20 = arith.constant 0 : index
    %c0_21 = arith.constant 0 : index
    %c0_22 = arith.constant 0 : index
    %33 = vector.load %arg6[%c0_20, %c0_21, %c0_22] : memref<3x24x128xf32, #tpu.memory_space<vmem>>, vector<1x24x128xf32>
    %34 = vector.shape_cast %33 : vector<1x24x128xf32> to vector<24x128xf32>
    %cst_23 = arith.constant 2.990000e-01 : f32
    %35 = vector.broadcast %cst_23 : f32 to vector<24x128xf32>
    %36 = arith.mulf %35, %34 : vector<24x128xf32>
    %c1_24 = arith.constant 1 : index
    %c0_25 = arith.constant 0 : index
    %c0_26 = arith.constant 0 : index
    %37 = vector.load %arg6[%c1_24, %c0_25, %c0_26] : memref<3x24x128xf32, #tpu.memory_space<vmem>>, vector<1x24x128xf32>
    %38 = vector.shape_cast %37 : vector<1x24x128xf32> to vector<24x128xf32>
    %cst_27 = arith.constant 5.870000e-01 : f32
    %39 = vector.broadcast %cst_27 : f32 to vector<24x128xf32>
    %40 = arith.mulf %39, %38 : vector<24x128xf32>
    %41 = arith.addf %36, %40 : vector<24x128xf32>
    %c2_28 = arith.constant 2 : index
    %c0_29 = arith.constant 0 : index
    %c0_30 = arith.constant 0 : index
    %42 = vector.load %arg6[%c2_28, %c0_29, %c0_30] : memref<3x24x128xf32, #tpu.memory_space<vmem>>, vector<1x24x128xf32>
    %43 = vector.shape_cast %42 : vector<1x24x128xf32> to vector<24x128xf32>
    %cst_31 = arith.constant 1.140000e-01 : f32
    %44 = vector.broadcast %cst_31 : f32 to vector<24x128xf32>
    %45 = arith.mulf %44, %43 : vector<24x128xf32>
    %46 = arith.addf %41, %45 : vector<24x128xf32>
    %c0_32 = arith.constant 0 : index
    %c0_33 = arith.constant 0 : index
    %47 = vector.load %arg8[%c0_32, %c0_33] : memref<24x128xf32, #tpu.memory_space<vmem>>, vector<24x128xf32>
    tpu.vector_store %arg8[%c0_32, %c0_33], %46 {strides = array<i32>} : memref<24x128xf32, #tpu.memory_space<vmem>>, vector<24x128xf32>,
    %c0_34 = arith.constant 0 : index
    %c0_35 = arith.constant 0 : index
    %48 = vector.load %arg7[%c0_34, %c0_35] : memref<24x128xf32, #tpu.memory_space<vmem>>, vector<23x128xf32>
    %c1_36 = arith.constant 1 : index
    %c0_37 = arith.constant 0 : index
    %49 = vector.load %arg7[%c1_36, %c0_37] : memref<24x128xf32, #tpu.memory_space<vmem>>, vector<23x128xf32>
    %50 = arith.addf %48, %49 : vector<23x128xf32>
    %c0_38 = arith.constant 0 : index
    %c0_39 = arith.constant 0 : index
    %51 = vector.load %arg7[%c0_38, %c0_39] : memref<24x128xf32, #tpu.memory_space<vmem>>, vector<24x127xf32>
    %c0_40 = arith.constant 0 : index
    %c1_41 = arith.constant 1 : index
    %52 = vector.load %arg7[%c0_40, %c1_41] : memref<24x128xf32, #tpu.memory_space<vmem>>, vector<24x127xf32>
    %53 = arith.addf %51, %52 : vector<24x127xf32>
    %c0_42 = arith.constant 0 : index
    %c0_43 = arith.constant 0 : index
    %54 = vector.load %arg8[%c0_42, %c0_43] : memref<24x128xf32, #tpu.memory_space<vmem>>, vector<23x128xf32>
    %c1_44 = arith.constant 1 : index
    %c0_45 = arith.constant 0 : index
    %55 = vector.load %arg8[%c1_44, %c0_45] : memref<24x128xf32, #tpu.memory_space<vmem>>, vector<23x128xf32>
    %56 = arith.addf %54, %55 : vector<23x128xf32>
    %c0_46 = arith.constant 0 : index
    %c0_47 = arith.constant 0 : index
    %57 = vector.load %arg8[%c0_46, %c0_47] : memref<24x128xf32, #tpu.memory_space<vmem>>, vector<24x127xf32>
    %c0_48 = arith.constant 0 : index
    %c1_49 = arith.constant 1 : index
    %58 = vector.load %arg8[%c0_48, %c1_49] : memref<24x128xf32, #tpu.memory_space<vmem>>, vector<24x127xf32>
    %59 = arith.addf %57, %58 : vector<24x127xf32>
    %60 = vector.extract_strided_slice %50 {offsets = [4, 4], sizes = [16, 16], strides = [1, 1]} : vector<23x128xf32> to vector<16x16xf32>
    %61 = vector.extract_strided_slice %50 {offsets = [4, 5], sizes = [16, 16], strides = [1, 1]} : vector<23x128xf32> to vector<16x16xf32>
    %62 = arith.subf %60, %61 : vector<16x16xf32>
    %63 = vector.extract_strided_slice %53 {offsets = [4, 4], sizes = [16, 16], strides = [1, 1]} : vector<24x127xf32> to vector<16x16xf32>
    %64 = vector.extract_strided_slice %53 {offsets = [5, 4], sizes = [16, 16], strides = [1, 1]} : vector<24x127xf32> to vector<16x16xf32>
    %65 = arith.subf %63, %64 : vector<16x16xf32>
    %cst_50 = arith.constant 5.000000e-01 : f32
    %66 = vector.broadcast %cst_50 : f32 to vector<16x16xf32>
    %67 = arith.mulf %66, %62 : vector<16x16xf32>
    %68 = math.absf %67 : vector<16x16xf32>
    %cst_51 = arith.constant 5.000000e-01 : f32
    %69 = vector.broadcast %cst_51 : f32 to vector<16x16xf32>
    %70 = arith.mulf %69, %65 : vector<16x16xf32>
    %71 = math.absf %70 : vector<16x16xf32>
    %72 = vector.extract_strided_slice %56 {offsets = [4, 4], sizes = [16, 16], strides = [1, 1]} : vector<23x128xf32> to vector<16x16xf32>
    %73 = vector.extract_strided_slice %56 {offsets = [4, 5], sizes = [16, 16], strides = [1, 1]} : vector<23x128xf32> to vector<16x16xf32>
    %74 = arith.subf %72, %73 : vector<16x16xf32>
    %75 = vector.extract_strided_slice %59 {offsets = [4, 4], sizes = [16, 16], strides = [1, 1]} : vector<24x127xf32> to vector<16x16xf32>
    %76 = vector.extract_strided_slice %59 {offsets = [5, 4], sizes = [16, 16], strides = [1, 1]} : vector<24x127xf32> to vector<16x16xf32>
    %77 = arith.subf %75, %76 : vector<16x16xf32>
    %cst_52 = arith.constant 5.000000e-01 : f32
    %78 = vector.broadcast %cst_52 : f32 to vector<16x16xf32>
    %79 = arith.mulf %78, %74 : vector<16x16xf32>
    %80 = math.absf %79 : vector<16x16xf32>
    %cst_53 = arith.constant 5.000000e-01 : f32
    %81 = vector.broadcast %cst_53 : f32 to vector<16x16xf32>
    %82 = arith.mulf %81, %77 : vector<16x16xf32>
    %83 = math.absf %82 : vector<16x16xf32>
    %cst_54 = arith.constant 2.000000e+00 : f32
    %84 = vector.broadcast %cst_54 : f32 to vector<16x16xf32>
    %85 = arith.mulf %84, %68 : vector<16x16xf32>
    %86 = arith.mulf %85, %80 : vector<16x16xf32>
    %cst_55 = arith.constant 4.61361022E-4 : f32
    %87 = vector.broadcast %cst_55 : f32 to vector<16x16xf32>
    %88 = arith.addf %86, %87 : vector<16x16xf32>
    %89 = arith.mulf %68, %68 : vector<16x16xf32>
    %90 = arith.mulf %80, %80 : vector<16x16xf32>
    %91 = arith.addf %89, %90 : vector<16x16xf32>
    %cst_56 = arith.constant 4.61361022E-4 : f32
    %92 = vector.broadcast %cst_56 : f32 to vector<16x16xf32>
    %93 = arith.addf %91, %92 : vector<16x16xf32>
    %94 = tpu.reciprocal %93 {approx = true} : vector<16x16xf32> -> vector<16x16xf32>
    %95 = arith.mulf %93, %94 : vector<16x16xf32>
    %cst_57 = arith.constant 2.000000e+00 : f32
    %96 = vector.broadcast %cst_57 : f32 to vector<16x16xf32>
    %97 = arith.subf %96, %95 : vector<16x16xf32>
    %98 = arith.mulf %94, %97 : vector<16x16xf32>
    %99 = arith.mulf %88, %98 : vector<16x16xf32>
    %cst_58 = arith.constant 2.000000e+00 : f32
    %100 = vector.broadcast %cst_58 : f32 to vector<16x16xf32>
    %101 = arith.mulf %100, %71 : vector<16x16xf32>
    %102 = arith.mulf %101, %83 : vector<16x16xf32>
    %cst_59 = arith.constant 4.61361022E-4 : f32
    %103 = vector.broadcast %cst_59 : f32 to vector<16x16xf32>
    %104 = arith.addf %102, %103 : vector<16x16xf32>
    %105 = arith.mulf %71, %71 : vector<16x16xf32>
    %106 = arith.mulf %83, %83 : vector<16x16xf32>
    %107 = arith.addf %105, %106 : vector<16x16xf32>
    %cst_60 = arith.constant 4.61361022E-4 : f32
    %108 = vector.broadcast %cst_60 : f32 to vector<16x16xf32>
    %109 = arith.addf %107, %108 : vector<16x16xf32>
    %110 = tpu.reciprocal %109 {approx = true} : vector<16x16xf32> -> vector<16x16xf32>
    %111 = arith.mulf %109, %110 : vector<16x16xf32>
    %cst_61 = arith.constant 2.000000e+00 : f32
    %112 = vector.broadcast %cst_61 : f32 to vector<16x16xf32>
    %113 = arith.subf %112, %111 : vector<16x16xf32>
    %114 = arith.mulf %110, %113 : vector<16x16xf32>
    %115 = arith.mulf %104, %114 : vector<16x16xf32>
    %116 = vector.extract_strided_slice %53 {offsets = [0, 0], sizes = [23, 127], strides = [1, 1]} : vector<24x127xf32> to vector<23x127xf32>
    %117 = vector.extract_strided_slice %53 {offsets = [1, 0], sizes = [23, 127], strides = [1, 1]} : vector<24x127xf32> to vector<23x127xf32>
    %118 = arith.addf %116, %117 : vector<23x127xf32>
    %119 = vector.extract_strided_slice %59 {offsets = [0, 0], sizes = [23, 127], strides = [1, 1]} : vector<24x127xf32> to vector<23x127xf32>
    %120 = vector.extract_strided_slice %59 {offsets = [1, 0], sizes = [23, 127], strides = [1, 1]} : vector<24x127xf32> to vector<23x127xf32>
    %121 = arith.addf %119, %120 : vector<23x127xf32>
    %122 = vector.extract_strided_slice %118 {offsets = [0, 0], sizes = [21, 127], strides = [1, 1]} : vector<23x127xf32> to vector<21x127xf32>
    %123 = vector.extract_strided_slice %118 {offsets = [2, 0], sizes = [21, 127], strides = [1, 1]} : vector<23x127xf32> to vector<21x127xf32>
    %124 = arith.addf %122, %123 : vector<21x127xf32>
    %125 = vector.extract_strided_slice %118 {offsets = [0, 0], sizes = [23, 125], strides = [1, 1]} : vector<23x127xf32> to vector<23x125xf32>
    %126 = vector.extract_strided_slice %118 {offsets = [0, 2], sizes = [23, 125], strides = [1, 1]} : vector<23x127xf32> to vector<23x125xf32>
    %127 = arith.addf %125, %126 : vector<23x125xf32>
    %128 = vector.extract_strided_slice %121 {offsets = [0, 0], sizes = [21, 127], strides = [1, 1]} : vector<23x127xf32> to vector<21x127xf32>
    %129 = vector.extract_strided_slice %121 {offsets = [2, 0], sizes = [21, 127], strides = [1, 1]} : vector<23x127xf32> to vector<21x127xf32>
    %130 = arith.addf %128, %129 : vector<21x127xf32>
    %131 = vector.extract_strided_slice %121 {offsets = [0, 0], sizes = [23, 125], strides = [1, 1]} : vector<23x127xf32> to vector<23x125xf32>
    %132 = vector.extract_strided_slice %121 {offsets = [0, 2], sizes = [23, 125], strides = [1, 1]} : vector<23x127xf32> to vector<23x125xf32>
    %133 = arith.addf %131, %132 : vector<23x125xf32>
    %134 = vector.extract_strided_slice %124 {offsets = [3, 3], sizes = [16, 16], strides = [1, 1]} : vector<21x127xf32> to vector<16x16xf32>
    %135 = vector.extract_strided_slice %124 {offsets = [3, 5], sizes = [16, 16], strides = [1, 1]} : vector<21x127xf32> to vector<16x16xf32>
    %136 = arith.subf %134, %135 : vector<16x16xf32>
    %137 = vector.extract_strided_slice %127 {offsets = [3, 3], sizes = [16, 16], strides = [1, 1]} : vector<23x125xf32> to vector<16x16xf32>
    %138 = vector.extract_strided_slice %127 {offsets = [5, 3], sizes = [16, 16], strides = [1, 1]} : vector<23x125xf32> to vector<16x16xf32>
    %139 = arith.subf %137, %138 : vector<16x16xf32>
    %cst_62 = arith.constant 2.500000e-01 : f32
    %140 = vector.broadcast %cst_62 : f32 to vector<16x16xf32>
    %141 = arith.mulf %140, %136 : vector<16x16xf32>
    %142 = math.absf %141 : vector<16x16xf32>
    %cst_63 = arith.constant 2.500000e-01 : f32
    %143 = vector.broadcast %cst_63 : f32 to vector<16x16xf32>
    %144 = arith.mulf %143, %139 : vector<16x16xf32>
    %145 = math.absf %144 : vector<16x16xf32>
    %146 = vector.extract_strided_slice %130 {offsets = [3, 3], sizes = [16, 16], strides = [1, 1]} : vector<21x127xf32> to vector<16x16xf32>
    %147 = vector.extract_strided_slice %130 {offsets = [3, 5], sizes = [16, 16], strides = [1, 1]} : vector<21x127xf32> to vector<16x16xf32>
    %148 = arith.subf %146, %147 : vector<16x16xf32>
    %149 = vector.extract_strided_slice %133 {offsets = [3, 3], sizes = [16, 16], strides = [1, 1]} : vector<23x125xf32> to vector<16x16xf32>
    %150 = vector.extract_strided_slice %133 {offsets = [5, 3], sizes = [16, 16], strides = [1, 1]} : vector<23x125xf32> to vector<16x16xf32>
    %151 = arith.subf %149, %150 : vector<16x16xf32>
    %cst_64 = arith.constant 2.500000e-01 : f32
    %152 = vector.broadcast %cst_64 : f32 to vector<16x16xf32>
    %153 = arith.mulf %152, %148 : vector<16x16xf32>
    %154 = math.absf %153 : vector<16x16xf32>
    %cst_65 = arith.constant 2.500000e-01 : f32
    %155 = vector.broadcast %cst_65 : f32 to vector<16x16xf32>
    %156 = arith.mulf %155, %151 : vector<16x16xf32>
    %157 = math.absf %156 : vector<16x16xf32>
    %cst_66 = arith.constant 2.000000e+00 : f32
    %158 = vector.broadcast %cst_66 : f32 to vector<16x16xf32>
    %159 = arith.mulf %158, %142 : vector<16x16xf32>
    %160 = arith.mulf %159, %154 : vector<16x16xf32>
    %cst_67 = arith.constant 4.61361022E-4 : f32
    %161 = vector.broadcast %cst_67 : f32 to vector<16x16xf32>
    %162 = arith.addf %160, %161 : vector<16x16xf32>
    %163 = arith.mulf %142, %142 : vector<16x16xf32>
    %164 = arith.mulf %154, %154 : vector<16x16xf32>
    %165 = arith.addf %163, %164 : vector<16x16xf32>
    %cst_68 = arith.constant 4.61361022E-4 : f32
    %166 = vector.broadcast %cst_68 : f32 to vector<16x16xf32>
    %167 = arith.addf %165, %166 : vector<16x16xf32>
    %168 = tpu.reciprocal %167 {approx = true} : vector<16x16xf32> -> vector<16x16xf32>
    %169 = arith.mulf %167, %168 : vector<16x16xf32>
    %cst_69 = arith.constant 2.000000e+00 : f32
    %170 = vector.broadcast %cst_69 : f32 to vector<16x16xf32>
    %171 = arith.subf %170, %169 : vector<16x16xf32>
    %172 = arith.mulf %168, %171 : vector<16x16xf32>
    %173 = arith.mulf %162, %172 : vector<16x16xf32>
    %174 = arith.addf %99, %173 : vector<16x16xf32>
    %cst_70 = arith.constant 5.000000e-01 : f32
    %175 = vector.broadcast %cst_70 : f32 to vector<16x16xf32>
    %176 = arith.mulf %175, %174 : vector<16x16xf32>
    %cst_71 = arith.constant 2.000000e+00 : f32
    %177 = vector.broadcast %cst_71 : f32 to vector<16x16xf32>
    %178 = arith.mulf %177, %145 : vector<16x16xf32>
    %179 = arith.mulf %178, %157 : vector<16x16xf32>
    %cst_72 = arith.constant 4.61361022E-4 : f32
    %180 = vector.broadcast %cst_72 : f32 to vector<16x16xf32>
    %181 = arith.addf %179, %180 : vector<16x16xf32>
    %182 = arith.mulf %145, %145 : vector<16x16xf32>
    %183 = arith.mulf %157, %157 : vector<16x16xf32>
    %184 = arith.addf %182, %183 : vector<16x16xf32>
    %cst_73 = arith.constant 4.61361022E-4 : f32
    %185 = vector.broadcast %cst_73 : f32 to vector<16x16xf32>
    %186 = arith.addf %184, %185 : vector<16x16xf32>
    %187 = tpu.reciprocal %186 {approx = true} : vector<16x16xf32> -> vector<16x16xf32>
    %188 = arith.mulf %186, %187 : vector<16x16xf32>
    %cst_74 = arith.constant 2.000000e+00 : f32
    %189 = vector.broadcast %cst_74 : f32 to vector<16x16xf32>
    %190 = arith.subf %189, %188 : vector<16x16xf32>
    %191 = arith.mulf %187, %190 : vector<16x16xf32>
    %192 = arith.mulf %181, %191 : vector<16x16xf32>
    %193 = arith.addf %115, %192 : vector<16x16xf32>
    %cst_75 = arith.constant 5.000000e-01 : f32
    %194 = vector.broadcast %cst_75 : f32 to vector<16x16xf32>
    %195 = arith.mulf %194, %193 : vector<16x16xf32>
    %196 = vector.extract_strided_slice %127 {offsets = [0, 0], sizes = [21, 125], strides = [1, 1]} : vector<23x125xf32> to vector<21x125xf32>
    %197 = vector.extract_strided_slice %127 {offsets = [2, 0], sizes = [21, 125], strides = [1, 1]} : vector<23x125xf32> to vector<21x125xf32>
    %198 = arith.addf %196, %197 : vector<21x125xf32>
    %199 = vector.extract_strided_slice %133 {offsets = [0, 0], sizes = [21, 125], strides = [1, 1]} : vector<23x125xf32> to vector<21x125xf32>
    %200 = vector.extract_strided_slice %133 {offsets = [2, 0], sizes = [21, 125], strides = [1, 1]} : vector<23x125xf32> to vector<21x125xf32>
    %201 = arith.addf %199, %200 : vector<21x125xf32>
    %202 = vector.extract_strided_slice %198 {offsets = [0, 0], sizes = [17, 125], strides = [1, 1]} : vector<21x125xf32> to vector<17x125xf32>
    %203 = vector.extract_strided_slice %198 {offsets = [4, 0], sizes = [17, 125], strides = [1, 1]} : vector<21x125xf32> to vector<17x125xf32>
    %204 = arith.addf %202, %203 : vector<17x125xf32>
    %205 = vector.extract_strided_slice %198 {offsets = [0, 0], sizes = [21, 121], strides = [1, 1]} : vector<21x125xf32> to vector<21x121xf32>
    %206 = vector.extract_strided_slice %198 {offsets = [0, 4], sizes = [21, 121], strides = [1, 1]} : vector<21x125xf32> to vector<21x121xf32>
    %207 = arith.addf %205, %206 : vector<21x121xf32>
    %208 = vector.extract_strided_slice %201 {offsets = [0, 0], sizes = [17, 125], strides = [1, 1]} : vector<21x125xf32> to vector<17x125xf32>
    %209 = vector.extract_strided_slice %201 {offsets = [4, 0], sizes = [17, 125], strides = [1, 1]} : vector<21x125xf32> to vector<17x125xf32>
    %210 = arith.addf %208, %209 : vector<17x125xf32>
    %211 = vector.extract_strided_slice %201 {offsets = [0, 0], sizes = [21, 121], strides = [1, 1]} : vector<21x125xf32> to vector<21x121xf32>
    %212 = vector.extract_strided_slice %201 {offsets = [0, 4], sizes = [21, 121], strides = [1, 1]} : vector<21x125xf32> to vector<21x121xf32>
    %213 = arith.addf %211, %212 : vector<21x121xf32>
    %214 = vector.extract_strided_slice %204 {offsets = [1, 1], sizes = [16, 16], strides = [1, 1]} : vector<17x125xf32> to vector<16x16xf32>
    %215 = vector.extract_strided_slice %204 {offsets = [1, 5], sizes = [16, 16], strides = [1, 1]} : vector<17x125xf32> to vector<16x16xf32>
    %216 = arith.subf %214, %215 : vector<16x16xf32>
    %217 = vector.extract_strided_slice %207 {offsets = [1, 1], sizes = [16, 16], strides = [1, 1]} : vector<21x121xf32> to vector<16x16xf32>
    %218 = vector.extract_strided_slice %207 {offsets = [5, 1], sizes = [16, 16], strides = [1, 1]} : vector<21x121xf32> to vector<16x16xf32>
    %219 = arith.subf %217, %218 : vector<16x16xf32>
    %cst_76 = arith.constant 1.250000e-01 : f32
    %220 = vector.broadcast %cst_76 : f32 to vector<16x16xf32>
    %221 = arith.mulf %220, %216 : vector<16x16xf32>
    %222 = math.absf %221 : vector<16x16xf32>
    %cst_77 = arith.constant 1.250000e-01 : f32
    %223 = vector.broadcast %cst_77 : f32 to vector<16x16xf32>
    %224 = arith.mulf %223, %219 : vector<16x16xf32>
    %225 = math.absf %224 : vector<16x16xf32>
    %226 = vector.extract_strided_slice %210 {offsets = [1, 1], sizes = [16, 16], strides = [1, 1]} : vector<17x125xf32> to vector<16x16xf32>
    %227 = vector.extract_strided_slice %210 {offsets = [1, 5], sizes = [16, 16], strides = [1, 1]} : vector<17x125xf32> to vector<16x16xf32>
    %228 = arith.subf %226, %227 : vector<16x16xf32>
    %229 = vector.extract_strided_slice %213 {offsets = [1, 1], sizes = [16, 16], strides = [1, 1]} : vector<21x121xf32> to vector<16x16xf32>
    %230 = vector.extract_strided_slice %213 {offsets = [5, 1], sizes = [16, 16], strides = [1, 1]} : vector<21x121xf32> to vector<16x16xf32>
    %231 = arith.subf %229, %230 : vector<16x16xf32>
    %cst_78 = arith.constant 1.250000e-01 : f32
    %232 = vector.broadcast %cst_78 : f32 to vector<16x16xf32>
    %233 = arith.mulf %232, %228 : vector<16x16xf32>
    %234 = math.absf %233 : vector<16x16xf32>
    %cst_79 = arith.constant 1.250000e-01 : f32
    %235 = vector.broadcast %cst_79 : f32 to vector<16x16xf32>
    %236 = arith.mulf %235, %231 : vector<16x16xf32>
    %237 = math.absf %236 : vector<16x16xf32>
    %238 = arith.maximumf %222, %234 : vector<16x16xf32>
    %239 = arith.maximumf %225, %237 : vector<16x16xf32>
    %240 = tpu.iota {dimensions = array<i32: 0>} : vector<16x16xi32>
    %241 = vector.broadcast %1 : i32 to vector<16x16xi32>
    %242 = arith.addi %240, %241 : vector<16x16xi32>
    %c16_i32_80 = arith.constant 16 : i32
    %243 = vector.broadcast %c16_i32_80 : i32 to vector<16x16xi32>
    %244 = arith.cmpi slt, %242, %243 : vector<16x16xi32>
    %cst_81 = arith.constant 0.000000e+00 : f32
    %245 = vector.broadcast %cst_81 : f32 to vector<16x16xf32>
    %246 = arith.select %244, %238, %245 : vector<16x16xi1>, vector<16x16xf32>
    %cst_82 = arith.constant 0.000000e+00 : f32
    %247 = vector.broadcast %cst_82 : f32 to vector<16x16xf32>
    %248 = arith.select %244, %239, %247 : vector<16x16xi1>, vector<16x16xf32>
    %249 = arith.addf %246, %248 : vector<16x16xf32>
    %cst_83 = arith.constant 5.000000e-01 : f32
    %250 = vector.broadcast %cst_83 : f32 to vector<16x16xf32>
    %251 = arith.mulf %250, %249 : vector<16x16xf32>
    %c0_84 = arith.constant 0 : index
    %c4 = arith.constant 4 : index
    %c4_85 = arith.constant 4 : index
    %252 = vector.load %arg5[%c0_84, %c4, %c4_85] : memref<3x24x128xf32, #tpu.memory_space<vmem>>, vector<1x17x17xf32>
    %253 = vector.shape_cast %252 : vector<1x17x17xf32> to vector<17x17xf32>
    %c1_86 = arith.constant 1 : index
    %c4_87 = arith.constant 4 : index
    %c4_88 = arith.constant 4 : index
    %254 = vector.load %arg5[%c1_86, %c4_87, %c4_88] : memref<3x24x128xf32, #tpu.memory_space<vmem>>, vector<1x17x17xf32>
    %255 = vector.shape_cast %254 : vector<1x17x17xf32> to vector<17x17xf32>
    %c2_89 = arith.constant 2 : index
    %c4_90 = arith.constant 4 : index
    %c4_91 = arith.constant 4 : index
    %256 = vector.load %arg5[%c2_89, %c4_90, %c4_91] : memref<3x24x128xf32, #tpu.memory_space<vmem>>, vector<1x17x17xf32>
    %257 = vector.shape_cast %256 : vector<1x17x17xf32> to vector<17x17xf32>
    %cst_92 = arith.constant 5.959000e-01 : f32
    %258 = vector.broadcast %cst_92 : f32 to vector<17x17xf32>
    %259 = arith.mulf %258, %253 : vector<17x17xf32>
    %cst_93 = arith.constant -2.746000e-01 : f32
    %260 = vector.broadcast %cst_93 : f32 to vector<17x17xf32>
    %261 = arith.mulf %260, %255 : vector<17x17xf32>
    %262 = arith.addf %259, %261 : vector<17x17xf32>
    %cst_94 = arith.constant -3.213000e-01 : f32
    %263 = vector.broadcast %cst_94 : f32 to vector<17x17xf32>
    %264 = arith.mulf %263, %257 : vector<17x17xf32>
    %265 = arith.addf %262, %264 : vector<17x17xf32>
    %266 = vector.extract_strided_slice %265 {offsets = [0, 0], sizes = [16, 17], strides = [1, 1]} : vector<17x17xf32> to vector<16x17xf32>
    %267 = vector.extract_strided_slice %265 {offsets = [1, 0], sizes = [16, 17], strides = [1, 1]} : vector<17x17xf32> to vector<16x17xf32>
    %268 = arith.addf %266, %267 : vector<16x17xf32>
    %269 = vector.extract_strided_slice %268 {offsets = [0, 0], sizes = [16, 16], strides = [1, 1]} : vector<16x17xf32> to vector<16x16xf32>
    %270 = vector.extract_strided_slice %268 {offsets = [0, 1], sizes = [16, 16], strides = [1, 1]} : vector<16x17xf32> to vector<16x16xf32>
    %271 = arith.addf %269, %270 : vector<16x16xf32>
    %cst_95 = arith.constant 2.500000e-01 : f32
    %272 = vector.broadcast %cst_95 : f32 to vector<16x16xf32>
    %273 = arith.mulf %272, %271 : vector<16x16xf32>
    %274 = math.absf %273 : vector<16x16xf32>
    %c0_96 = arith.constant 0 : index
    %c4_97 = arith.constant 4 : index
    %c4_98 = arith.constant 4 : index
    %275 = vector.load %arg6[%c0_96, %c4_97, %c4_98] : memref<3x24x128xf32, #tpu.memory_space<vmem>>, vector<1x17x17xf32>
    %276 = vector.shape_cast %275 : vector<1x17x17xf32> to vector<17x17xf32>
    %c1_99 = arith.constant 1 : index
    %c4_100 = arith.constant 4 : index
    %c4_101 = arith.constant 4 : index
    %277 = vector.load %arg6[%c1_99, %c4_100, %c4_101] : memref<3x24x128xf32, #tpu.memory_space<vmem>>, vector<1x17x17xf32>
    %278 = vector.shape_cast %277 : vector<1x17x17xf32> to vector<17x17xf32>
    %c2_102 = arith.constant 2 : index
    %c4_103 = arith.constant 4 : index
    %c4_104 = arith.constant 4 : index
    %279 = vector.load %arg6[%c2_102, %c4_103, %c4_104] : memref<3x24x128xf32, #tpu.memory_space<vmem>>, vector<1x17x17xf32>
    %280 = vector.shape_cast %279 : vector<1x17x17xf32> to vector<17x17xf32>
    %cst_105 = arith.constant 5.959000e-01 : f32
    %281 = vector.broadcast %cst_105 : f32 to vector<17x17xf32>
    %282 = arith.mulf %281, %276 : vector<17x17xf32>
    %cst_106 = arith.constant -2.746000e-01 : f32
    %283 = vector.broadcast %cst_106 : f32 to vector<17x17xf32>
    %284 = arith.mulf %283, %278 : vector<17x17xf32>
    %285 = arith.addf %282, %284 : vector<17x17xf32>
    %cst_107 = arith.constant -3.213000e-01 : f32
    %286 = vector.broadcast %cst_107 : f32 to vector<17x17xf32>
    %287 = arith.mulf %286, %280 : vector<17x17xf32>
    %288 = arith.addf %285, %287 : vector<17x17xf32>
    %289 = vector.extract_strided_slice %288 {offsets = [0, 0], sizes = [16, 17], strides = [1, 1]} : vector<17x17xf32> to vector<16x17xf32>
    %290 = vector.extract_strided_slice %288 {offsets = [1, 0], sizes = [16, 17], strides = [1, 1]} : vector<17x17xf32> to vector<16x17xf32>
    %291 = arith.addf %289, %290 : vector<16x17xf32>
    %292 = vector.extract_strided_slice %291 {offsets = [0, 0], sizes = [16, 16], strides = [1, 1]} : vector<16x17xf32> to vector<16x16xf32>
    %293 = vector.extract_strided_slice %291 {offsets = [0, 1], sizes = [16, 16], strides = [1, 1]} : vector<16x17xf32> to vector<16x16xf32>
    %294 = arith.addf %292, %293 : vector<16x16xf32>
    %cst_108 = arith.constant 2.500000e-01 : f32
    %295 = vector.broadcast %cst_108 : f32 to vector<16x16xf32>
    %296 = arith.mulf %295, %294 : vector<16x16xf32>
    %297 = math.absf %296 : vector<16x16xf32>
    %cst_109 = arith.constant 2.000000e+00 : f32
    %298 = vector.broadcast %cst_109 : f32 to vector<16x16xf32>
    %299 = arith.mulf %298, %274 : vector<16x16xf32>
    %300 = arith.mulf %299, %297 : vector<16x16xf32>
    %cst_110 = arith.constant 4.61361022E-4 : f32
    %301 = vector.broadcast %cst_110 : f32 to vector<16x16xf32>
    %302 = arith.addf %300, %301 : vector<16x16xf32>
    %303 = arith.mulf %274, %274 : vector<16x16xf32>
    %304 = arith.mulf %297, %297 : vector<16x16xf32>
    %305 = arith.addf %303, %304 : vector<16x16xf32>
    %cst_111 = arith.constant 4.61361022E-4 : f32
    %306 = vector.broadcast %cst_111 : f32 to vector<16x16xf32>
    %307 = arith.addf %305, %306 : vector<16x16xf32>
    %308 = tpu.reciprocal %307 {approx = true} : vector<16x16xf32> -> vector<16x16xf32>
    %309 = arith.mulf %307, %308 : vector<16x16xf32>
    %cst_112 = arith.constant 2.000000e+00 : f32
    %310 = vector.broadcast %cst_112 : f32 to vector<16x16xf32>
    %311 = arith.subf %310, %309 : vector<16x16xf32>
    %312 = arith.mulf %308, %311 : vector<16x16xf32>
    %313 = arith.mulf %302, %312 : vector<16x16xf32>
    %c0_113 = arith.constant 0 : index
    %c4_114 = arith.constant 4 : index
    %c4_115 = arith.constant 4 : index
    %314 = vector.load %arg5[%c0_113, %c4_114, %c4_115] : memref<3x24x128xf32, #tpu.memory_space<vmem>>, vector<1x17x17xf32>
    %315 = vector.shape_cast %314 : vector<1x17x17xf32> to vector<17x17xf32>
    %c1_116 = arith.constant 1 : index
    %c4_117 = arith.constant 4 : index
    %c4_118 = arith.constant 4 : index
    %316 = vector.load %arg5[%c1_116, %c4_117, %c4_118] : memref<3x24x128xf32, #tpu.memory_space<vmem>>, vector<1x17x17xf32>
    %317 = vector.shape_cast %316 : vector<1x17x17xf32> to vector<17x17xf32>
    %c2_119 = arith.constant 2 : index
    %c4_120 = arith.constant 4 : index
    %c4_121 = arith.constant 4 : index
    %318 = vector.load %arg5[%c2_119, %c4_120, %c4_121] : memref<3x24x128xf32, #tpu.memory_space<vmem>>, vector<1x17x17xf32>
    %319 = vector.shape_cast %318 : vector<1x17x17xf32> to vector<17x17xf32>
    %cst_122 = arith.constant 2.115000e-01 : f32
    %320 = vector.broadcast %cst_122 : f32 to vector<17x17xf32>
    %321 = arith.mulf %320, %315 : vector<17x17xf32>
    %cst_123 = arith.constant -5.227000e-01 : f32
    %322 = vector.broadcast %cst_123 : f32 to vector<17x17xf32>
    %323 = arith.mulf %322, %317 : vector<17x17xf32>
    %324 = arith.addf %321, %323 : vector<17x17xf32>
    %cst_124 = arith.constant 3.112000e-01 : f32
    %325 = vector.broadcast %cst_124 : f32 to vector<17x17xf32>
    %326 = arith.mulf %325, %319 : vector<17x17xf32>
    %327 = arith.addf %324, %326 : vector<17x17xf32>
    %328 = vector.extract_strided_slice %327 {offsets = [0, 0], sizes = [16, 17], strides = [1, 1]} : vector<17x17xf32> to vector<16x17xf32>
    %329 = vector.extract_strided_slice %327 {offsets = [1, 0], sizes = [16, 17], strides = [1, 1]} : vector<17x17xf32> to vector<16x17xf32>
    %330 = arith.addf %328, %329 : vector<16x17xf32>
    %331 = vector.extract_strided_slice %330 {offsets = [0, 0], sizes = [16, 16], strides = [1, 1]} : vector<16x17xf32> to vector<16x16xf32>
    %332 = vector.extract_strided_slice %330 {offsets = [0, 1], sizes = [16, 16], strides = [1, 1]} : vector<16x17xf32> to vector<16x16xf32>
    %333 = arith.addf %331, %332 : vector<16x16xf32>
    %cst_125 = arith.constant 2.500000e-01 : f32
    %334 = vector.broadcast %cst_125 : f32 to vector<16x16xf32>
    %335 = arith.mulf %334, %333 : vector<16x16xf32>
    %336 = math.absf %335 : vector<16x16xf32>
    %c0_126 = arith.constant 0 : index
    %c4_127 = arith.constant 4 : index
    %c4_128 = arith.constant 4 : index
    %337 = vector.load %arg6[%c0_126, %c4_127, %c4_128] : memref<3x24x128xf32, #tpu.memory_space<vmem>>, vector<1x17x17xf32>
    %338 = vector.shape_cast %337 : vector<1x17x17xf32> to vector<17x17xf32>
    %c1_129 = arith.constant 1 : index
    %c4_130 = arith.constant 4 : index
    %c4_131 = arith.constant 4 : index
    %339 = vector.load %arg6[%c1_129, %c4_130, %c4_131] : memref<3x24x128xf32, #tpu.memory_space<vmem>>, vector<1x17x17xf32>
    %340 = vector.shape_cast %339 : vector<1x17x17xf32> to vector<17x17xf32>
    %c2_132 = arith.constant 2 : index
    %c4_133 = arith.constant 4 : index
    %c4_134 = arith.constant 4 : index
    %341 = vector.load %arg6[%c2_132, %c4_133, %c4_134] : memref<3x24x128xf32, #tpu.memory_space<vmem>>, vector<1x17x17xf32>
    %342 = vector.shape_cast %341 : vector<1x17x17xf32> to vector<17x17xf32>
    %cst_135 = arith.constant 2.115000e-01 : f32
    %343 = vector.broadcast %cst_135 : f32 to vector<17x17xf32>
    %344 = arith.mulf %343, %338 : vector<17x17xf32>
    %cst_136 = arith.constant -5.227000e-01 : f32
    %345 = vector.broadcast %cst_136 : f32 to vector<17x17xf32>
    %346 = arith.mulf %345, %340 : vector<17x17xf32>
    %347 = arith.addf %344, %346 : vector<17x17xf32>
    %cst_137 = arith.constant 3.112000e-01 : f32
    %348 = vector.broadcast %cst_137 : f32 to vector<17x17xf32>
    %349 = arith.mulf %348, %342 : vector<17x17xf32>
    %350 = arith.addf %347, %349 : vector<17x17xf32>
    %351 = vector.extract_strided_slice %350 {offsets = [0, 0], sizes = [16, 17], strides = [1, 1]} : vector<17x17xf32> to vector<16x17xf32>
    %352 = vector.extract_strided_slice %350 {offsets = [1, 0], sizes = [16, 17], strides = [1, 1]} : vector<17x17xf32> to vector<16x17xf32>
    %353 = arith.addf %351, %352 : vector<16x17xf32>
    %354 = vector.extract_strided_slice %353 {offsets = [0, 0], sizes = [16, 16], strides = [1, 1]} : vector<16x17xf32> to vector<16x16xf32>
    %355 = vector.extract_strided_slice %353 {offsets = [0, 1], sizes = [16, 16], strides = [1, 1]} : vector<16x17xf32> to vector<16x16xf32>
    %356 = arith.addf %354, %355 : vector<16x16xf32>
    %cst_138 = arith.constant 2.500000e-01 : f32
    %357 = vector.broadcast %cst_138 : f32 to vector<16x16xf32>
    %358 = arith.mulf %357, %356 : vector<16x16xf32>
    %359 = math.absf %358 : vector<16x16xf32>
    %cst_139 = arith.constant 2.000000e+00 : f32
    %360 = vector.broadcast %cst_139 : f32 to vector<16x16xf32>
    %361 = arith.mulf %360, %336 : vector<16x16xf32>
    %362 = arith.mulf %361, %359 : vector<16x16xf32>
    %cst_140 = arith.constant 4.61361022E-4 : f32
    %363 = vector.broadcast %cst_140 : f32 to vector<16x16xf32>
    %364 = arith.addf %362, %363 : vector<16x16xf32>
    %365 = arith.mulf %336, %336 : vector<16x16xf32>
    %366 = arith.mulf %359, %359 : vector<16x16xf32>
    %367 = arith.addf %365, %366 : vector<16x16xf32>
    %cst_141 = arith.constant 4.61361022E-4 : f32
    %368 = vector.broadcast %cst_141 : f32 to vector<16x16xf32>
    %369 = arith.addf %367, %368 : vector<16x16xf32>
    %370 = tpu.reciprocal %369 {approx = true} : vector<16x16xf32> -> vector<16x16xf32>
    %371 = arith.mulf %369, %370 : vector<16x16xf32>
    %cst_142 = arith.constant 2.000000e+00 : f32
    %372 = vector.broadcast %cst_142 : f32 to vector<16x16xf32>
    %373 = arith.subf %372, %371 : vector<16x16xf32>
    %374 = arith.mulf %370, %373 : vector<16x16xf32>
    %375 = arith.mulf %364, %374 : vector<16x16xf32>
    %376 = arith.addf %313, %375 : vector<16x16xf32>
    %cst_143 = arith.constant 5.000000e-01 : f32
    %377 = vector.broadcast %cst_143 : f32 to vector<16x16xf32>
    %378 = arith.mulf %377, %376 : vector<16x16xf32>
    %cst_144 = arith.constant 4.200000e+00 : f32
    %379 = vector.broadcast %cst_144 : f32 to vector<16x16xf32>
    %380 = arith.mulf %379, %176 : vector<16x16xf32>
    %cst_145 = arith.constant 5.000000e-01 : f32
    %381 = vector.broadcast %cst_145 : f32 to vector<16x16xf32>
    %382 = arith.mulf %381, %380 : vector<16x16xf32>
    %383 = math.tanh %382 : vector<16x16xf32>
    %cst_146 = arith.constant 1.000000e+00 : f32
    %384 = vector.broadcast %cst_146 : f32 to vector<16x16xf32>
    %385 = arith.addf %383, %384 : vector<16x16xf32>
    %cst_147 = arith.constant 5.000000e-01 : f32
    %386 = vector.broadcast %cst_147 : f32 to vector<16x16xf32>
    %387 = arith.mulf %386, %385 : vector<16x16xf32>
    %cst_148 = arith.constant 4.200000e+00 : f32
    %388 = vector.broadcast %cst_148 : f32 to vector<16x16xf32>
    %389 = arith.mulf %388, %195 : vector<16x16xf32>
    %cst_149 = arith.constant 5.000000e-01 : f32
    %390 = vector.broadcast %cst_149 : f32 to vector<16x16xf32>
    %391 = arith.mulf %390, %389 : vector<16x16xf32>
    %392 = math.tanh %391 : vector<16x16xf32>
    %cst_150 = arith.constant 1.000000e+00 : f32
    %393 = vector.broadcast %cst_150 : f32 to vector<16x16xf32>
    %394 = arith.addf %392, %393 : vector<16x16xf32>
    %cst_151 = arith.constant 5.000000e-01 : f32
    %395 = vector.broadcast %cst_151 : f32 to vector<16x16xf32>
    %396 = arith.mulf %395, %394 : vector<16x16xf32>
    %cst_152 = arith.constant 4.200000e+00 : f32
    %397 = vector.broadcast %cst_152 : f32 to vector<16x16xf32>
    %398 = arith.mulf %397, %378 : vector<16x16xf32>
    %cst_153 = arith.constant 5.000000e-01 : f32
    %399 = vector.broadcast %cst_153 : f32 to vector<16x16xf32>
    %400 = arith.mulf %399, %398 : vector<16x16xf32>
    %401 = math.tanh %400 : vector<16x16xf32>
    %cst_154 = arith.constant 1.000000e+00 : f32
    %402 = vector.broadcast %cst_154 : f32 to vector<16x16xf32>
    %403 = arith.addf %401, %402 : vector<16x16xf32>
    %cst_155 = arith.constant 5.000000e-01 : f32
    %404 = vector.broadcast %cst_155 : f32 to vector<16x16xf32>
    %405 = arith.mulf %404, %403 : vector<16x16xf32>
    %406 = arith.mulf %387, %246 : vector<16x16xf32>
    %407 = arith.mulf %396, %248 : vector<16x16xf32>
    %408 = arith.addf %406, %407 : vector<16x16xf32>
    %409 = arith.mulf %405, %251 : vector<16x16xf32>
    %410 = arith.addf %408, %409 : vector<16x16xf32>
    %411 = vector.shape_cast %410 : vector<16x16xf32> to vector<1x16x16xf32>
    %cst_156 = arith.constant dense<0.000000e+00> : vector<1xf32>
    %412 = vector.multi_reduction <add>, %411, %cst_156 [1, 2] : vector<1x16x16xf32> to vector<1xf32>
    %413 = vector.shape_cast %412 : vector<1xf32> to vector<1x1x1xf32>
    %414 = vector.extract %413[0, 0, 0] : f32 from vector<1x1x1xf32>
    %415 = arith.addf %246, %248 : vector<16x16xf32>
    %416 = arith.addf %415, %251 : vector<16x16xf32>
    %417 = vector.shape_cast %416 : vector<16x16xf32> to vector<1x16x16xf32>
    %cst_157 = arith.constant dense<0.000000e+00> : vector<1xf32>
    %418 = vector.multi_reduction <add>, %417, %cst_157 [1, 2] : vector<1x16x16xf32> to vector<1xf32>
    %419 = vector.shape_cast %418 : vector<1xf32> to vector<1x1x1xf32>
    %420 = vector.extract %419[0, 0, 0] : f32 from vector<1x1x1xf32>
    %421 = vector.broadcast %414 : f32 to vector<1x128xf32>
    %c0_158 = arith.constant 0 : index
    %c0_159 = arith.constant 0 : index
    %c0_160 = arith.constant 0 : index
    %c0_161 = arith.constant 0 : index
    %422 = vector.load %arg4[%c0_158, %c0_159, %c0_160, %c0_161] : memref<1x1x2x128xf32, #tpu.memory_space<vmem>>, vector<1x1x1x128xf32>
    %423 = vector.shape_cast %422 : vector<1x1x1x128xf32> to vector<1x128xf32>
    %424 = vector.shape_cast %421 : vector<1x128xf32> to vector<1x1x1x128xf32>
    tpu.vector_store %arg4[%c0_158, %c0_159, %c0_160, %c0_161], %424 {strides = array<i32>} : memref<1x1x2x128xf32, #tpu.memory_space<vmem>>, vector<1x1x1x128xf32>,
    %425 = vector.broadcast %420 : f32 to vector<1x128xf32>
    %c0_162 = arith.constant 0 : index
    %c0_163 = arith.constant 0 : index
    %c1_164 = arith.constant 1 : index
    %c0_165 = arith.constant 0 : index
    %426 = vector.load %arg4[%c0_162, %c0_163, %c1_164, %c0_165] : memref<1x1x2x128xf32, #tpu.memory_space<vmem>>, vector<1x1x1x128xf32>
    %427 = vector.shape_cast %426 : vector<1x1x1x128xf32> to vector<1x128xf32>
    %428 = vector.shape_cast %425 : vector<1x128xf32> to vector<1x1x1x128xf32>
    tpu.vector_store %arg4[%c0_162, %c0_163, %c1_164, %c0_165], %428 {strides = array<i32>} : memref<1x1x2x128xf32, #tpu.memory_space<vmem>>, vector<1x1x1x128xf32>,
    return
  }
  func.func @transform_2(%arg0: i32, %arg1: i32) -> (i32, i32, i32, i32) {
    %c0_i32 = arith.constant 0 : i32
    %c0_i32_0 = arith.constant 0 : i32
    %c0_i32_1 = arith.constant 0 : i32
    return %arg0, %arg1, %c0_i32, %c0_i32_0 : i32, i32, i32, i32
  }
}

</mosaic_0001>

<llo_original>
// kernel: haarpsi_pallas.1
$region0: #{haarpsi_pallas.1}
  #allocation0 [shape = 'u32[]', space=smem, size = 0x4, offset = 0x4, fixed_abs, tag = 'smem constant byte address 0x4 - core index']
  #allocation1 [shape = 'u32[144,128]{1,0:T(1,128)}', space=vmem, size = 0x12000, scoped, tag = 'internal scratch']
  #allocation2 [shape = 'f32[3,24,128]{2,1,0:T(8,128)}', space=vmem, size = 0x9000, scoped, tag = 'scratch operand']
  #allocation3 [shape = 'f32[3,24,128]{2,1,0:T(8,128)}', space=vmem, size = 0x9000, scoped, tag = 'scratch operand']
  #allocation4 [shape = 'f32[24,128]{1,0:T(8,128)}', space=vmem, size = 0x3000, scoped, tag = 'scratch operand']
  #allocation5 [shape = 'f32[24,128]{1,0:T(8,128)}', space=vmem, size = 0x3000, scoped, tag = 'scratch operand']
  #allocation6 [shape = 's32[2]{0}', space=sflag, size = 0x8, scoped, tag = 'scratch operand']
  #allocation7 [shape = 's32[]', space=sflag, size = 0x4, offset = 0, fixed_abs, tag = 'sflag constant byte address 0x0 - dummy sync flag']
  #allocation8 [shape = 's32[]', space=sflag, size = 0x4, offset = 0, fixed_abs, tag = 'sflag constant byte address 0x0 - dummy sync flag']
  %s0 = inlined_call_operand.vmem [shape: f32[2,3,24,128], index: 0, kind: input, shape index: {}]
  %s1 = inlined_call_operand.vmem [shape: f32[2,3,24,128], index: 1, kind: input, shape index: {}]
  %s2 = inlined_call_operand.vmem [shape: f32[2,1,2,128], index: 2, kind: output, shape index: {}]
  %s3 = sld [smem:[#allocation0]]
  $region93: #{haarpsi_pallas.1} parent=0
    _
  %s5 = ssub.s32 1, %s3
  %s6 = scalar_select 0, %s5, %s3
  loop: start=0, step=1, limit=3
  $region2: #{haarpsi_pallas.1} parent=0 // loop_pre_header
    _
  $region3: #{haarpsi_pallas.1} parent=0 // loop_header
    %s8 = sphi 0, %s12
    %p9 = scmp.ge.s32.totalorder %s8, 3
    %s14 = sphi 0, %s24
    %s15 = sphi 0, %s20
    %s16 = sphi 0, %s14
    %s17 = sphi 0, %s15
    %s29 = sphi 0, %s31
    %s32 = sphi 0, %s29
    %s42 = sphi 0, %s32
  $region4: #{haarpsi_pallas.1} parent=0 // loop_header_branch
    %11 = sbr.rel (%p9) target = $region8
  $region5: #{haarpsi_pallas.1} parent=0 // loop_body
    %s13 = ssub.s32 %s8, 1
    %s18 = sadd.s32 1, %s15
    %p19 = scmp.ge.s32.totalorder %s18, 1
    %s20 = scalar_select %p19, 0, %s18
    %s21 = sadd.s32 1, %s14
    %s22 = scalar_select %p19, %s21, %s14
    %p23 = scmp.ge.s32.totalorder %s22, 2
    %s24 = scalar_select %p23, 0, %s22
    %s25 = ssub.s32 %s14, %s24
    %s26 = ssub.s32 %s15, %s20
    %s27 = sor.u32 %s25, %s26
    %p28 = scmp.eq.s32.totalorder %s27, 0
    %s30 = sadd.s32 %s29, 1
    %s31 = scalar_select %p28, %s29, %s30
    %p33 = pneg %p28
    %p34 = scmp.eq.s32.totalorder %s8, 1
    %p35 = por %p33, %p34
    %p36 = scmp.ne.s32.totalorder %s29, %s32
    %p37 = scmp.eq.s32.totalorder %s8, 0
    %p38 = por %p36, %p37
    %p39 = scmp.ne.s32.totalorder %s29, %s32
    %p40 = scmp.eq.s32.totalorder %s13, 1
    %p41 = por %p39, %p40
    %p43 = scmp.ne.s32.totalorder %s32, %s42
    %p44 = scmp.eq.s32.totalorder %s13, 0
    %p45 = por %p43, %p44
    %p46 = scmp.lt.s32.totalorder %s8, 2
    // Predicated region
    $region9: #{haarpsi_pallas.1} parent=5 // pred_check
      %p47 = pneg %p46
    $region10: #{haarpsi_pallas.1} parent=5 // pred_check_branch
      %49 = sbr.rel (%p47) target = $region12
    $region11: #{haarpsi_pallas.1} parent=5 // pred_region
      %p50 = pneg %p38
      %p51 = pneg %p35
      %p52 = scmp.lt.s32.totalorder %s14, 1
      %s53 = scalar_select %p52, %s14, 1
      %p54 = scmp.lt.s32.totalorder %s15, 0
      %s55 = scalar_select %p54, %s15, 0
      %s56 = sadd.s32 %s55, %s53
      %s57 = smul.addr %s56, 2
      %s58 = scalar_lea.vmem %s2, %s57
      %p59 = scmp.lt.s32.totalorder %s14, 1
      %s60 = scalar_select %p59, %s14, 1
      %p61 = scmp.lt.s32.totalorder %s15, 0
      %s62 = scalar_select %p61, %s15, 0
      %s63 = sadd.s32 %s62, %s60
      %s64 = smul.addr %s63, 2
      %s65 = scalar_lea.vmem %s2, %s64
      %s66 = smul.u32 %s15, 16
      %s67 = smul.u32 %s14, 72
      %s68 = sadd.s32 %s66, %s67
      %s69 = scalar_lea.vmem %s0, %s68
      %p71 = scmp.lt.u32.totalorder 72, 8
      %p72 = pneg %p71
      // Predicated region
      $region13: #{haarpsi_pallas.1} parent=11 // pred_check
        _
      $region14: #{haarpsi_pallas.1} parent=11 // pred_check_branch
        %74 = sbr.rel (%p71) target = $region16
      $region15: #{haarpsi_pallas.1} parent=11 // pred_region
        %s89 = sand.u32 72, 7
        %p90 = scmp.eq.s32.totalorder %s89, 0
        // Predicated region
        $region28: #{haarpsi_pallas.1} parent=15 // pred_check
          %p91 = pneg %p90
        $region29: #{haarpsi_pallas.1} parent=15 // pred_check_branch
          %93 = sbr.rel (%p91) target = $region31
        $region30: #{haarpsi_pallas.1} parent=15 // pred_region
          loop: start=0, step=1, limit=1
          $region32: #{haarpsi_pallas.1} parent=30 // loop_pre_header
            _
          $region33: #{haarpsi_pallas.1} parent=30 // loop_header
            %s95 = sphi 0, %s99
            %p96 = scmp.ge.s32.totalorder %s95, 1
            %s100 = sphi %s69, %s69
            %s101 = sphi [#allocation2], [#allocation2]
          $region34: #{haarpsi_pallas.1} parent=30 // loop_header_branch
            %98 = sbr.rel (%p96) target = $region38
          $region35: #{haarpsi_pallas.1} parent=30 // loop_body
            %v102 = vld [vmem:[%s100] sm:$0xff]
            %103 = vst [vmem:[%s101] sm:$0xff] %v102
            %v104 = vld [vmem:[%s100 + $0x8] sm:$0xff]
            %105 = vst [vmem:[%s101 + $0x8] sm:$0xff] %v104
            %v106 = vld [vmem:[%s100 + $0x10] sm:$0xff]
            %107 = vst [vmem:[%s101 + $0x10] sm:$0xff] %v106
            %v108 = vld [vmem:[%s100 + $0x18] sm:$0xff]
            %109 = vst [vmem:[%s101 + $0x18] sm:$0xff] %v108
            %v110 = vld [vmem:[%s100 + $0x20] sm:$0xff]
            %111 = vst [vmem:[%s101 + $0x20] sm:$0xff] %v110
            %v112 = vld [vmem:[%s100 + $0x28] sm:$0xff]
            %113 = vst [vmem:[%s101 + $0x28] sm:$0xff] %v112
            %v114 = vld [vmem:[%s100 + $0x30] sm:$0xff]
            %115 = vst [vmem:[%s101 + $0x30] sm:$0xff] %v114
            %v116 = vld [vmem:[%s100 + $0x38] sm:$0xff]
            %117 = vst [vmem:[%s101 + $0x38] sm:$0xff] %v116
            %v118 = vld [vmem:[%s100 + $0x40] sm:$0xff]
            %119 = vst [vmem:[%s101 + $0x40] sm:$0xff] %v118
          $region36: #{haarpsi_pallas.1} parent=30 // loop_footer
            %s99 = sadd.s32 1, %s95
          $region37: #{haarpsi_pallas.1} parent=30 // loop_footer_branch
            %94 = sbr.rel target = $region33
          $region38: #{haarpsi_pallas.1} parent=30 // loop_exit
            _
        $region31: #{haarpsi_pallas.1} parent=15 // pred_fallthru
          _
        %p120 = pneg %p90
        // Predicated region
        $region39: #{haarpsi_pallas.1} parent=15 // pred_check
          _
        $region40: #{haarpsi_pallas.1} parent=15 // pred_check_branch
          %122 = sbr.rel (%p90) target = $region42
        $region41: #{haarpsi_pallas.1} parent=15 // pred_region
          %s123 = sand.u32 72, 7
        $region42: #{haarpsi_pallas.1} parent=15 // pred_fallthru
          _
      $region16: #{haarpsi_pallas.1} parent=11 // pred_fallthru
        _
      // Predicated region
      $region17: #{haarpsi_pallas.1} parent=11 // pred_check
        %p75 = pneg %p71
      $region18: #{haarpsi_pallas.1} parent=11 // pred_check_branch
        %77 = sbr.rel (%p75) target = $region20
      $region19: #{haarpsi_pallas.1} parent=11 // pred_region
        %s78 = sshllo.u32 0, 72
        loop: start=0, step=1, limit=1
        $region21: #{haarpsi_pallas.1} parent=19 // loop_pre_header
          _
        $region22: #{haarpsi_pallas.1} parent=19 // loop_header
          %s80 = sphi 0, %s84
          %p81 = scmp.ge.s32.totalorder %s80, 1
          %s85 = sphi %s69, %s69
          %s86 = sphi [#allocation2], [#allocation2]
        $region23: #{haarpsi_pallas.1} parent=19 // loop_header_branch
          %83 = sbr.rel (%p81) target = $region27
        $region24: #{haarpsi_pallas.1} parent=19 // loop_body
          %v87 = vld [vmem:[%s85] sm:%s78]
          %88 = vst [vmem:[%s86] sm:%s78] %v87
        $region25: #{haarpsi_pallas.1} parent=19 // loop_footer
          %s84 = sadd.s32 1, %s80
        $region26: #{haarpsi_pallas.1} parent=19 // loop_footer_branch
          %79 = sbr.rel target = $region22
        $region27: #{haarpsi_pallas.1} parent=19 // loop_exit
          _
      $region20: #{haarpsi_pallas.1} parent=11 // pred_fallthru
        _
      // Predicated region
      $region43: #{haarpsi_pallas.1} parent=11 // pred_check
        _
      $region44: #{haarpsi_pallas.1} parent=11 // pred_check_branch
        %126 = sbr.rel (0) target = $region46
      $region45: #{haarpsi_pallas.1} parent=11 // pred_region
        %127 = vsyncadd [#allocation6], 1152
      $region46: #{haarpsi_pallas.1} parent=11 // pred_fallthru
        _
      %s128 = scalar_lea.vmem %s1, %s68
      %s129 = scalar_lea.sflag [#allocation6], 1
      %p131 = scmp.lt.u32.totalorder 72, 8
      %p132 = pneg %p131
      // Predicated region
      $region47: #{haarpsi_pallas.1} parent=11 // pred_check
        _
      $region48: #{haarpsi_pallas.1} parent=11 // pred_check_branch
        %134 = sbr.rel (%p131) target = $region50
      $region49: #{haarpsi_pallas.1} parent=11 // pred_region
        %s149 = sand.u32 72, 7
        %p150 = scmp.eq.s32.totalorder %s149, 0
        // Predicated region
        $region62: #{haarpsi_pallas.1} parent=49 // pred_check
          %p151 = pneg %p150
        $region63: #{haarpsi_pallas.1} parent=49 // pred_check_branch
          %153 = sbr.rel (%p151) target = $region65
        $region64: #{haarpsi_pallas.1} parent=49 // pred_region
          loop: start=0, step=1, limit=1
          $region66: #{haarpsi_pallas.1} parent=64 // loop_pre_header
            _
          $region67: #{haarpsi_pallas.1} parent=64 // loop_header
            %s155 = sphi 0, %s159
            %p156 = scmp.ge.s32.totalorder %s155, 1
            %s160 = sphi %s128, %s128
            %s161 = sphi [#allocation3], [#allocation3]
          $region68: #{haarpsi_pallas.1} parent=64 // loop_header_branch
            %158 = sbr.rel (%p156) target = $region72
          $region69: #{haarpsi_pallas.1} parent=64 // loop_body
            %v162 = vld [vmem:[%s160] sm:$0xff]
            %163 = vst [vmem:[%s161] sm:$0xff] %v162
            %v164 = vld [vmem:[%s160 + $0x8] sm:$0xff]
            %165 = vst [vmem:[%s161 + $0x8] sm:$0xff] %v164
            %v166 = vld [vmem:[%s160 + $0x10] sm:$0xff]
            %167 = vst [vmem:[%s161 + $0x10] sm:$0xff] %v166
            %v168 = vld [vmem:[%s160 + $0x18] sm:$0xff]
            %169 = vst [vmem:[%s161 + $0x18] sm:$0xff] %v168
            %v170 = vld [vmem:[%s160 + $0x20] sm:$0xff]
            %171 = vst [vmem:[%s161 + $0x20] sm:$0xff] %v170
            %v172 = vld [vmem:[%s160 + $0x28] sm:$0xff]
            %173 = vst [vmem:[%s161 + $0x28] sm:$0xff] %v172
            %v174 = vld [vmem:[%s160 + $0x30] sm:$0xff]
            %175 = vst [vmem:[%s161 + $0x30] sm:$0xff] %v174
            %v176 = vld [vmem:[%s160 + $0x38] sm:$0xff]
            %177 = vst [vmem:[%s161 + $0x38] sm:$0xff] %v176
            %v178 = vld [vmem:[%s160 + $0x40] sm:$0xff]
            %179 = vst [vmem:[%s161 + $0x40] sm:$0xff] %v178
          $region70: #{haarpsi_pallas.1} parent=64 // loop_footer
            %s159 = sadd.s32 1, %s155
          $region71: #{haarpsi_pallas.1} parent=64 // loop_footer_branch
            %154 = sbr.rel target = $region67
          $region72: #{haarpsi_pallas.1} parent=64 // loop_exit
            _
        $region65: #{haarpsi_pallas.1} parent=49 // pred_fallthru
          _
        %p180 = pneg %p150
        // Predicated region
        $region73: #{haarpsi_pallas.1} parent=49 // pred_check
          _
        $region74: #{haarpsi_pallas.1} parent=49 // pred_check_branch
          %182 = sbr.rel (%p150) target = $region76
        $region75: #{haarpsi_pallas.1} parent=49 // pred_region
          %s183 = sand.u32 72, 7
        $region76: #{haarpsi_pallas.1} parent=49 // pred_fallthru
          _
      $region50: #{haarpsi_pallas.1} parent=11 // pred_fallthru
        _
      // Predicated region
      $region51: #{haarpsi_pallas.1} parent=11 // pred_check
        %p135 = pneg %p131
      $region52: #{haarpsi_pallas.1} parent=11 // pred_check_branch
        %137 = sbr.rel (%p135) target = $region54
      $region53: #{haarpsi_pallas.1} parent=11 // pred_region
        %s138 = sshllo.u32 0, 72
        loop: start=0, step=1, limit=1
        $region55: #{haarpsi_pallas.1} parent=53 // loop_pre_header
          _
        $region56: #{haarpsi_pallas.1} parent=53 // loop_header
          %s140 = sphi 0, %s144
          %p141 = scmp.ge.s32.totalorder %s140, 1
          %s145 = sphi %s128, %s128
          %s146 = sphi [#allocation3], [#allocation3]
        $region57: #{haarpsi_pallas.1} parent=53 // loop_header_branch
          %143 = sbr.rel (%p141) target = $region61
        $region58: #{haarpsi_pallas.1} parent=53 // loop_body
          %v147 = vld [vmem:[%s145] sm:%s138]
          %148 = vst [vmem:[%s146] sm:%s138] %v147
        $region59: #{haarpsi_pallas.1} parent=53 // loop_footer
          %s144 = sadd.s32 1, %s140
        $region60: #{haarpsi_pallas.1} parent=53 // loop_footer_branch
          %139 = sbr.rel target = $region56
        $region61: #{haarpsi_pallas.1} parent=53 // loop_exit
          _
      $region54: #{haarpsi_pallas.1} parent=11 // pred_fallthru
        _
      // Predicated region
      $region77: #{haarpsi_pallas.1} parent=11 // pred_check
        _
      $region78: #{haarpsi_pallas.1} parent=11 // pred_check_branch
        %186 = sbr.rel (0) target = $region80
      $region79: #{haarpsi_pallas.1} parent=11 // pred_region
        %187 = vsyncadd %s129, 1152
      $region80: #{haarpsi_pallas.1} parent=11 // pred_fallthru
        _
      %s188 = smul.u32 3, 24
      %s189 = smul.u32 %s188, 1
      %s190 = sshll.u32 %s189, 4
      %191 = dma.done [#allocation6], %s190
      %s192 = sshll.u32 %s189, 4
      %193 = dma.done %s129, %s192
      %v194 = vld [vmem:[#allocation2] sm:$0xff]
      %v195 = vld [vmem:[#allocation2 + $0x8] sm:$0xff]
      %v196 = vld [vmem:[#allocation2 + $0x10] sm:$0xff]
      %v197 = vmul.f32 %v194, 0.299
      %v198 = vmul.f32 %v195, 0.299
      %v199 = vmul.f32 %v196, 0.299
      %s200 = scalar_lea.vmem [#allocation2], 24
      %v201 = vld [vmem:[%s200] sm:$0xff]
      %v202 = vld [vmem:[%s200 + $0x8] sm:$0xff]
      %v203 = vld [vmem:[%s200 + $0x10] sm:$0xff]
      %v204 = vmul.f32 %v201, 0.587
      %v205 = vmul.f32 %v202, 0.587
      %v206 = vmul.f32 %v203, 0.587
      %v207 = vadd.f32 %v197, %v204
      %v208 = vadd.f32 %v198, %v205
      %v209 = vadd.f32 %v199, %v206
      %s210 = scalar_lea.vmem [#allocation2], 48
      %v211 = vld [vmem:[%s210] sm:$0xff]
      %v212 = vld [vmem:[%s210 + $0x8] sm:$0xff]
      %v213 = vld [vmem:[%s210 + $0x10] sm:$0xff]
      %v214 = vmul.f32 %v211, 0.114
      %v215 = vmul.f32 %v212, 0.114
      %v216 = vmul.f32 %v213, 0.114
      %v217 = vadd.f32 %v207, %v214
      %v218 = vadd.f32 %v208, %v215
      %v219 = vadd.f32 %v209, %v216
      %220 = vst [vmem:[#allocation4] sm:$0xff] %v217
      %221 = vst [vmem:[#allocation4 + $0x8] sm:$0xff] %v218
      %222 = vst [vmem:[#allocation4 + $0x10] sm:$0xff] %v219
      %v223 = vld [vmem:[#allocation3] sm:$0xff]
      %v224 = vld [vmem:[#allocation3 + $0x8] sm:$0xff]
      %v225 = vld [vmem:[#allocation3 + $0x10] sm:$0xff]
      %v226 = vmul.f32 %v223, 0.299
      %v227 = vmul.f32 %v224, 0.299
      %v228 = vmul.f32 %v225, 0.299
      %s229 = scalar_lea.vmem [#allocation3], 24
      %v230 = vld [vmem:[%s229] sm:$0xff]
      %v231 = vld [vmem:[%s229 + $0x8] sm:$0xff]
      %v232 = vld [vmem:[%s229 + $0x10] sm:$0xff]
      %v233 = vmul.f32 %v230, 0.587
      %v234 = vmul.f32 %v231, 0.587
      %v235 = vmul.f32 %v232, 0.587
      %v236 = vadd.f32 %v226, %v233
      %v237 = vadd.f32 %v227, %v234
      %v238 = vadd.f32 %v228, %v235
      %s239 = scalar_lea.vmem [#allocation3], 48
      %v240 = vld [vmem:[%s239] sm:$0xff]
      %v241 = vld [vmem:[%s239 + $0x8] sm:$0xff]
      %v242 = vld [vmem:[%s239 + $0x10] sm:$0xff]
      %v243 = vmul.f32 %v240, 0.114
      %v244 = vmul.f32 %v241, 0.114
      %v245 = vmul.f32 %v242, 0.114
      %v246 = vadd.f32 %v236, %v243
      %v247 = vadd.f32 %v237, %v244
      %v248 = vadd.f32 %v238, %v245
      %249 = vst [vmem:[#allocation5] sm:$0xff] %v246
      %250 = vst [vmem:[#allocation5 + $0x8] sm:$0xff] %v247
      %251 = vst [vmem:[#allocation5 + $0x10] sm:$0xff] %v248
      %v252 = vld [vmem:[#allocation4] sm:$0xff]
      %v253 = vld [vmem:[#allocation4 + $0x8] sm:$0xff]
      %v254 = vld [vmem:[#allocation4 + $0x10] sm:$0x7f]
      %v255 = vld [vmem:[#allocation4 + $0x1] sm:$0xff]
      %v256 = vld [vmem:[#allocation4 + $0x9] sm:$0xff]
      %v257 = vld [vmem:[#allocation4 + $0x11] sm:$0x7f]
      %v258 = vadd.f32 %v252, %v255
      %v259 = vadd.f32 %v253, %v256
      %v260 = vadd.f32 %v254, %v257
      %v261 = vld [vmem:[#allocation4] sm:$0xff]
      %v262 = vld [vmem:[#allocation4 + $0x8] sm:$0xff]
      %v263 = vld [vmem:[#allocation4 + $0x10] sm:$0xff]
      %267 = vrot.lane.b32.xlu0 %v261, 127
      %v268 = vpop.permute.xlu0 %267
      %269 = vrot.lane.b32.xlu0 %v262, 127
      %v270 = vpop.permute.xlu0 %269
      %271 = vrot.lane.b32.xlu0 %v263, 127
      %v272 = vpop.permute.xlu0 %271
      %v276 = vadd.f32 %v261, %v268
      %v277 = vadd.f32 %v262, %v270
      %v278 = vadd.f32 %v263, %v272
      %v279 = vld [vmem:[#allocation5] sm:$0xff]
      %v280 = vld [vmem:[#allocation5 + $0x8] sm:$0xff]
      %v281 = vld [vmem:[#allocation5 + $0x10] sm:$0x7f]
      %v282 = vld [vmem:[#allocation5 + $0x1] sm:$0xff]
      %v283 = vld [vmem:[#allocation5 + $0x9] sm:$0xff]
      %v284 = vld [vmem:[#allocation5 + $0x11] sm:$0x7f]
      %v285 = vadd.f32 %v279, %v282
      %v286 = vadd.f32 %v280, %v283
      %v287 = vadd.f32 %v281, %v284
      %v288 = vld [vmem:[#allocation5] sm:$0xff]
      %v289 = vld [vmem:[#allocation5 + $0x8] sm:$0xff]
      %v290 = vld [vmem:[#allocation5 + $0x10] sm:$0xff]
      %294 = vrot.lane.b32.xlu0 %v288, 127
      %v295 = vpop.permute.xlu0 %294
      %296 = vrot.lane.b32.xlu0 %v289, 127
      %v297 = vpop.permute.xlu0 %296
      %298 = vrot.lane.b32.xlu0 %v290, 127
      %v299 = vpop.permute.xlu0 %298
      %v303 = vadd.f32 %v288, %v295
      %v304 = vadd.f32 %v289, %v297
      %v305 = vadd.f32 %v290, %v299
      %309 = vrot.lane.b32.xlu0 %v258, 127
      %v310 = vpop.permute.xlu0 %309
      %311 = vrot.lane.b32.xlu0 %v259, 127
      %v312 = vpop.permute.xlu0 %311
      %313 = vrot.lane.b32.xlu0 %v260, 127
      %v314 = vpop.permute.xlu0 %313
      %v318 = vsub.f32 %v258, %v310
      %v319 = vsub.f32 %v259, %v312
      %v320 = vsub.f32 %v260, %v314
      %vm324 = vcmask 1046528
      %v325 = vrot.slane %v276, 1
      %v326 = vrot.slane %v277, 1
      %v327 = vsel %vm324, %v325, %v326
      %v328 = vrot.slane %v278, 1
      %v329 = vsel %vm324, %v326, %v328
      %v333 = vsub.f32 %v276, %v327
      %v334 = vsub.f32 %v277, %v329
      %v335 = vsub.f32 %v278, %v328
      %v336 = vmul.f32 %v318, 0.5
      %v337 = vmul.f32 %v319, 0.5
      %v338 = vmul.f32 %v320, 0.5
      %v339 = vand.u32 2147483647, %v336
      %v340 = vand.u32 2147483647, %v337
      %v341 = vand.u32 2147483647, %v338
      %v342 = vmul.f32 %v333, 0.5
      %v343 = vmul.f32 %v334, 0.5
      %v344 = vmul.f32 %v335, 0.5
      %v345 = vand.u32 2147483647, %v342
      %v346 = vand.u32 2147483647, %v343
      %v347 = vand.u32 2147483647, %v344
      %351 = vrot.lane.b32.xlu0 %v285, 127
      %v352 = vpop.permute.xlu0 %351
      %353 = vrot.lane.b32.xlu0 %v286, 127
      %v354 = vpop.permute.xlu0 %353
      %355 = vrot.lane.b32.xlu0 %v287, 127
      %v356 = vpop.permute.xlu0 %355
      %v360 = vsub.f32 %v285, %v352
      %v361 = vsub.f32 %v286, %v354
      %v362 = vsub.f32 %v287, %v356
      %v366 = vrot.slane %v303, 1
      %v367 = vrot.slane %v304, 1
      %v368 = vsel %vm324, %v366, %v367
      %v369 = vrot.slane %v305, 1
      %v370 = vsel %vm324, %v367, %v369
      %v374 = vsub.f32 %v303, %v368
      %v375 = vsub.f32 %v304, %v370
      %v376 = vsub.f32 %v305, %v369
      %v377 = vmul.f32 %v360, 0.5
      %v378 = vmul.f32 %v361, 0.5
      %v379 = vmul.f32 %v362, 0.5
      %v380 = vand.u32 2147483647, %v377
      %v381 = vand.u32 2147483647, %v378
      %v382 = vand.u32 2147483647, %v379
      %v383 = vmul.f32 %v374, 0.5
      %v384 = vmul.f32 %v375, 0.5
      %v385 = vmul.f32 %v376, 0.5
      %v386 = vand.u32 2147483647, %v383
      %v387 = vand.u32 2147483647, %v384
      %v388 = vand.u32 2147483647, %v385
      %v389 = vmul.f32 %v339, 2.0
      %v390 = vmul.f32 %v340, 2.0
      %v391 = vmul.f32 %v341, 2.0
      %v392 = vmul.f32 %v389, %v380
      %v393 = vmul.f32 %v390, %v381
      %v394 = vmul.f32 %v391, %v382
      %v395 = vadd.f32 %v392, 0.00046136102
      %v396 = vadd.f32 %v393, 0.00046136102
      %v397 = vadd.f32 %v394, 0.00046136102
      %v398 = vmul.f32 %v339, %v339
      %v399 = vmul.f32 %v340, %v340
      %v400 = vmul.f32 %v341, %v341
      %v401 = vmul.f32 %v380, %v380
      %v402 = vmul.f32 %v381, %v381
      %v403 = vmul.f32 %v382, %v382
      %v404 = vadd.f32 %v398, %v401
      %v405 = vadd.f32 %v399, %v402
      %v406 = vadd.f32 %v400, %v403
      %v407 = vadd.f32 %v404, 0.00046136102
      %v408 = vadd.f32 %v405, 0.00046136102
      %v409 = vadd.f32 %v406, 0.00046136102
      %v410 = vrcp.pop %v407
      %v411 = vrcp.pop %v408
      %v412 = vrcp.pop %v409
      %v413 = vmul.f32 %v407, %v410
      %v414 = vmul.f32 %v408, %v411
      %v415 = vmul.f32 %v409, %v412
      %v416 = vsub.f32 2.0, %v413
      %v417 = vsub.f32 2.0, %v414
      %v418 = vsub.f32 2.0, %v415
      %v419 = vmul.f32 %v410, %v416
      %v420 = vmul.f32 %v411, %v417
      %v421 = vmul.f32 %v412, %v418
      %v422 = vmul.f32 %v395, %v419
      %v423 = vmul.f32 %v396, %v420
      %v424 = vmul.f32 %v397, %v421
      %v425 = vmul.f32 %v345, 2.0
      %v426 = vmul.f32 %v346, 2.0
      %v427 = vmul.f32 %v347, 2.0
      %v428 = vmul.f32 %v425, %v386
      %v429 = vmul.f32 %v426, %v387
      %v430 = vmul.f32 %v427, %v388
      %v431 = vadd.f32 %v428, 0.00046136102
      %v432 = vadd.f32 %v429, 0.00046136102
      %v433 = vadd.f32 %v430, 0.00046136102
      %v434 = vmul.f32 %v345, %v345
      %v435 = vmul.f32 %v346, %v346
      %v436 = vmul.f32 %v347, %v347
      %v437 = vmul.f32 %v386, %v386
      %v438 = vmul.f32 %v387, %v387
      %v439 = vmul.f32 %v388, %v388
      %v440 = vadd.f32 %v434, %v437
      %v441 = vadd.f32 %v435, %v438
      %v442 = vadd.f32 %v436, %v439
      %v443 = vadd.f32 %v440, 0.00046136102
      %v444 = vadd.f32 %v441, 0.00046136102
      %v445 = vadd.f32 %v442, 0.00046136102
      %v446 = vrcp.pop %v443
      %v447 = vrcp.pop %v444
      %v448 = vrcp.pop %v445
      %v449 = vmul.f32 %v443, %v446
      %v450 = vmul.f32 %v444, %v447
      %v451 = vmul.f32 %v445, %v448
      %v452 = vsub.f32 2.0, %v449
      %v453 = vsub.f32 2.0, %v450
      %v454 = vsub.f32 2.0, %v451
      %v455 = vmul.f32 %v446, %v452
      %v456 = vmul.f32 %v447, %v453
      %v457 = vmul.f32 %v448, %v454
      %v458 = vmul.f32 %v431, %v455
      %v459 = vmul.f32 %v432, %v456
      %v460 = vmul.f32 %v433, %v457
      %v461 = vadd.f32 %v276, %v327
      %v462 = vadd.f32 %v277, %v329
      %v463 = vadd.f32 %v278, %v328
      %v464 = vadd.f32 %v303, %v368
      %v465 = vadd.f32 %v304, %v370
      %v466 = vadd.f32 %v305, %v369
      %vm470 = vcmask 1045504
      %v471 = vrot.slane %v461, 2
      %v472 = vrot.slane %v462, 2
      %v473 = vsel %vm470, %v471, %v472
      %v474 = vrot.slane %v463, 2
      %v475 = vsel %vm470, %v472, %v474
      %v479 = vadd.f32 %v461, %v473
      %v480 = vadd.f32 %v462, %v475
      %v481 = vadd.f32 %v463, %v474
      %482 = vrot.lane.b32.xlu0 %v461, 126
      %v483 = vpop.permute.xlu0 %482
      %484 = vrot.lane.b32.xlu0 %v462, 126
      %v485 = vpop.permute.xlu0 %484
      %486 = vrot.lane.b32.xlu0 %v463, 126
      %v487 = vpop.permute.xlu0 %486
      %v491 = vadd.f32 %v461, %v483
      %v492 = vadd.f32 %v462, %v485
      %v493 = vadd.f32 %v463, %v487
      %v497 = vrot.slane %v464, 2
      %v498 = vrot.slane %v465, 2
      %v499 = vsel %vm470, %v497, %v498
      %v500 = vrot.slane %v466, 2
      %v501 = vsel %vm470, %v498, %v500
      %v505 = vadd.f32 %v464, %v499
      %v506 = vadd.f32 %v465, %v501
      %v507 = vadd.f32 %v466, %v500
      %508 = vrot.lane.b32.xlu0 %v464, 126
      %v509 = vpop.permute.xlu0 %508
      %510 = vrot.lane.b32.xlu0 %v465, 126
      %v511 = vpop.permute.xlu0 %510
      %512 = vrot.lane.b32.xlu0 %v466, 126
      %v513 = vpop.permute.xlu0 %512
      %v517 = vadd.f32 %v464, %v509
      %v518 = vadd.f32 %v465, %v511
      %v519 = vadd.f32 %v466, %v513
      %523 = vrot.lane.b32.xlu0 %v479, 126
      %v524 = vpop.permute.xlu0 %523
      %525 = vrot.lane.b32.xlu0 %v480, 126
      %v526 = vpop.permute.xlu0 %525
      %527 = vrot.lane.b32.xlu0 %v481, 126
      %v528 = vpop.permute.xlu0 %527
      %v532 = vsub.f32 %v479, %v524
      %v533 = vsub.f32 %v480, %v526
      %v534 = vsub.f32 %v481, %v528
      %v538 = vrot.slane %v491, 2
      %v539 = vrot.slane %v492, 2
      %v540 = vsel %vm470, %v538, %v539
      %v541 = vrot.slane %v493, 2
      %v542 = vsel %vm470, %v539, %v541
      %v546 = vsub.f32 %v491, %v540
      %v547 = vsub.f32 %v492, %v542
      %v548 = vsub.f32 %v493, %v541
      %v549 = vmul.f32 %v532, 0.25
      %v550 = vmul.f32 %v533, 0.25
      %v551 = vmul.f32 %v534, 0.25
      %v552 = vand.u32 2147483647, %v549
      %v553 = vand.u32 2147483647, %v550
      %v554 = vand.u32 2147483647, %v551
      %v555 = vmul.f32 %v546, 0.25
      %v556 = vmul.f32 %v547, 0.25
      %v557 = vmul.f32 %v548, 0.25
      %v558 = vand.u32 2147483647, %v555
      %v559 = vand.u32 2147483647, %v556
      %v560 = vand.u32 2147483647, %v557
      %564 = vrot.lane.b32.xlu0 %v505, 126
      %v565 = vpop.permute.xlu0 %564
      %566 = vrot.lane.b32.xlu0 %v506, 126
      %v567 = vpop.permute.xlu0 %566
      %568 = vrot.lane.b32.xlu0 %v507, 126
      %v569 = vpop.permute.xlu0 %568
      %v573 = vsub.f32 %v505, %v565
      %v574 = vsub.f32 %v506, %v567
      %v575 = vsub.f32 %v507, %v569
      %v579 = vrot.slane %v517, 2
      %v580 = vrot.slane %v518, 2
      %v581 = vsel %vm470, %v579, %v580
      %v582 = vrot.slane %v519, 2
      %v583 = vsel %vm470, %v580, %v582
      %v587 = vsub.f32 %v517, %v581
      %v588 = vsub.f32 %v518, %v583
      %v589 = vsub.f32 %v519, %v582
      %v590 = vmul.f32 %v573, 0.25
      %v591 = vmul.f32 %v574, 0.25
      %v592 = vmul.f32 %v575, 0.25
      %v593 = vand.u32 2147483647, %v590
      %v594 = vand.u32 2147483647, %v591
      %v595 = vand.u32 2147483647, %v592
      %v596 = vmul.f32 %v587, 0.25
      %v597 = vmul.f32 %v588, 0.25
      %v598 = vmul.f32 %v589, 0.25
      %v599 = vand.u32 2147483647, %v596
      %v600 = vand.u32 2147483647, %v597
      %v601 = vand.u32 2147483647, %v598
      %v602 = vmul.f32 %v552, 2.0
      %v603 = vmul.f32 %v553, 2.0
      %v604 = vmul.f32 %v554, 2.0
      %v605 = vmul.f32 %v602, %v593
      %v606 = vmul.f32 %v603, %v594
      %v607 = vmul.f32 %v604, %v595
      %v608 = vadd.f32 %v605, 0.00046136102
      %v609 = vadd.f32 %v606, 0.00046136102
      %v610 = vadd.f32 %v607, 0.00046136102
      %v611 = vmul.f32 %v552, %v552
      %v612 = vmul.f32 %v553, %v553
      %v613 = vmul.f32 %v554, %v554
      %v614 = vmul.f32 %v593, %v593
      %v615 = vmul.f32 %v594, %v594
      %v616 = vmul.f32 %v595, %v595
      %v617 = vadd.f32 %v611, %v614
      %v618 = vadd.f32 %v612, %v615
      %v619 = vadd.f32 %v613, %v616
      %v620 = vadd.f32 %v617, 0.00046136102
      %v621 = vadd.f32 %v618, 0.00046136102
      %v622 = vadd.f32 %v619, 0.00046136102
      %v623 = vrcp.pop %v620
      %v624 = vrcp.pop %v621
      %v625 = vrcp.pop %v622
      %v626 = vmul.f32 %v620, %v623
      %v627 = vmul.f32 %v621, %v624
      %v628 = vmul.f32 %v622, %v625
      %v629 = vsub.f32 2.0, %v626
      %v630 = vsub.f32 2.0, %v627
      %v631 = vsub.f32 2.0, %v628
      %v632 = vmul.f32 %v623, %v629
      %v633 = vmul.f32 %v624, %v630
      %v634 = vmul.f32 %v625, %v631
      %v635 = vmul.f32 %v608, %v632
      %v636 = vmul.f32 %v609, %v633
      %v637 = vmul.f32 %v610, %v634
      %vm641 = vcmask 1040384
      %v642 = vrot.slane %v635, 7
      %v643 = vrot.slane %v636, 7
      %v644 = vsel %vm641, %v642, %v643
      %v645 = vrot.slane %v637, 7
      %v646 = vsel %vm641, %v643, %v645
      %647 = vrot.lane.b32.xlu0 %v642, 1
      %v648 = vpop.permute.xlu0 %647
      %649 = vrot.lane.b32.xlu0 %v644, 1
      %v650 = vpop.permute.xlu0 %649
      %651 = vrot.lane.b32.xlu0 %v646, 1
      %v652 = vpop.permute.xlu0 %651
      %v656 = vadd.f32 %v422, %v648
      %v657 = vadd.f32 %v423, %v650
      %v658 = vadd.f32 %v424, %v652
      %v659 = vmul.f32 %v656, 0.5
      %v660 = vmul.f32 %v657, 0.5
      %v661 = vmul.f32 %v658, 0.5
      %v662 = vmul.f32 %v558, 2.0
      %v663 = vmul.f32 %v559, 2.0
      %v664 = vmul.f32 %v560, 2.0
      %v665 = vmul.f32 %v662, %v599
      %v666 = vmul.f32 %v663, %v600
      %v667 = vmul.f32 %v664, %v601
      %v668 = vadd.f32 %v665, 0.00046136102
      %v669 = vadd.f32 %v666, 0.00046136102
      %v670 = vadd.f32 %v667, 0.00046136102
      %v671 = vmul.f32 %v558, %v558
      %v672 = vmul.f32 %v559, %v559
      %v673 = vmul.f32 %v560, %v560
      %v674 = vmul.f32 %v599, %v599
      %v675 = vmul.f32 %v600, %v600
      %v676 = vmul.f32 %v601, %v601
      %v677 = vadd.f32 %v671, %v674
      %v678 = vadd.f32 %v672, %v675
      %v679 = vadd.f32 %v673, %v676
      %v680 = vadd.f32 %v677, 0.00046136102
      %v681 = vadd.f32 %v678, 0.00046136102
      %v682 = vadd.f32 %v679, 0.00046136102
      %v683 = vrcp.pop %v680
      %v684 = vrcp.pop %v681
      %v685 = vrcp.pop %v682
      %v686 = vmul.f32 %v680, %v683
      %v687 = vmul.f32 %v681, %v684
      %v688 = vmul.f32 %v682, %v685
      %v689 = vsub.f32 2.0, %v686
      %v690 = vsub.f32 2.0, %v687
      %v691 = vsub.f32 2.0, %v688
      %v692 = vmul.f32 %v683, %v689
      %v693 = vmul.f32 %v684, %v690
      %v694 = vmul.f32 %v685, %v691
      %v695 = vmul.f32 %v668, %v692
      %v696 = vmul.f32 %v669, %v693
      %v697 = vmul.f32 %v670, %v694
      %v701 = vrot.slane %v695, 7
      %v702 = vrot.slane %v696, 7
      %v703 = vsel %vm641, %v701, %v702
      %v704 = vrot.slane %v697, 7
      %v705 = vsel %vm641, %v702, %v704
      %706 = vrot.lane.b32.xlu0 %v701, 1
      %v707 = vpop.permute.xlu0 %706
      %708 = vrot.lane.b32.xlu0 %v703, 1
      %v709 = vpop.permute.xlu0 %708
      %710 = vrot.lane.b32.xlu0 %v705, 1
      %v711 = vpop.permute.xlu0 %710
      %v715 = vadd.f32 %v458, %v707
      %v716 = vadd.f32 %v459, %v709
      %v717 = vadd.f32 %v460, %v711
      %v718 = vmul.f32 %v715, 0.5
      %v719 = vmul.f32 %v716, 0.5
      %v720 = vmul.f32 %v717, 0.5
      %v721 = vadd.f32 %v491, %v540
      %v722 = vadd.f32 %v492, %v542
      %v723 = vadd.f32 %v493, %v541
      %v724 = vadd.f32 %v517, %v581
      %v725 = vadd.f32 %v518, %v583
      %v726 = vadd.f32 %v519, %v582
      %vm730 = vcmask 1043456
      %v731 = vrot.slane %v721, 4
      %v732 = vrot.slane %v722, 4
      %v733 = vsel %vm730, %v731, %v732
      %v734 = vrot.slane %v723, 4
      %v735 = vsel %vm730, %v732, %v734
      %v739 = vadd.f32 %v721, %v733
      %v740 = vadd.f32 %v722, %v735
      %v741 = vadd.f32 %v723, %v734
      %742 = vrot.lane.b32.xlu0 %v721, 124
      %v743 = vpop.permute.xlu0 %742
      %744 = vrot.lane.b32.xlu0 %v722, 124
      %v745 = vpop.permute.xlu0 %744
      %746 = vrot.lane.b32.xlu0 %v723, 124
      %v747 = vpop.permute.xlu0 %746
      %v751 = vadd.f32 %v721, %v743
      %v752 = vadd.f32 %v722, %v745
      %v753 = vadd.f32 %v723, %v747
      %v757 = vrot.slane %v724, 4
      %v758 = vrot.slane %v725, 4
      %v759 = vsel %vm730, %v757, %v758
      %v760 = vrot.slane %v726, 4
      %v761 = vsel %vm730, %v758, %v760
      %v765 = vadd.f32 %v724, %v759
      %v766 = vadd.f32 %v725, %v761
      %v767 = vadd.f32 %v726, %v760
      %768 = vrot.lane.b32.xlu0 %v724, 124
      %v769 = vpop.permute.xlu0 %768
      %770 = vrot.lane.b32.xlu0 %v725, 124
      %v771 = vpop.permute.xlu0 %770
      %772 = vrot.lane.b32.xlu0 %v726, 124
      %v773 = vpop.permute.xlu0 %772
      %v777 = vadd.f32 %v724, %v769
      %v778 = vadd.f32 %v725, %v771
      %v779 = vadd.f32 %v726, %v773
      %783 = vrot.lane.b32.xlu0 %v739, 124
      %v784 = vpop.permute.xlu0 %783
      %785 = vrot.lane.b32.xlu0 %v740, 124
      %v786 = vpop.permute.xlu0 %785
      %787 = vrot.lane.b32.xlu0 %v741, 124
      %v788 = vpop.permute.xlu0 %787
      %v792 = vsub.f32 %v739, %v784
      %v793 = vsub.f32 %v740, %v786
      %v794 = vsub.f32 %v741, %v788
      %v798 = vrot.slane %v751, 4
      %v799 = vrot.slane %v752, 4
      %v800 = vsel %vm730, %v798, %v799
      %v801 = vrot.slane %v753, 4
      %v802 = vsel %vm730, %v799, %v801
      %v806 = vsub.f32 %v751, %v800
      %v807 = vsub.f32 %v752, %v802
      %v808 = vsub.f32 %v753, %v801
      %v809 = vmul.f32 %v792, 0.125
      %v810 = vmul.f32 %v793, 0.125
      %v811 = vmul.f32 %v794, 0.125
      %v812 = vand.u32 2147483647, %v809
      %v813 = vand.u32 2147483647, %v810
      %v814 = vand.u32 2147483647, %v811
      %v815 = vmul.f32 %v806, 0.125
      %v816 = vmul.f32 %v807, 0.125
      %v817 = vmul.f32 %v808, 0.125
      %v818 = vand.u32 2147483647, %v815
      %v819 = vand.u32 2147483647, %v816
      %v820 = vand.u32 2147483647, %v817
      %824 = vrot.lane.b32.xlu0 %v765, 124
      %v825 = vpop.permute.xlu0 %824
      %826 = vrot.lane.b32.xlu0 %v766, 124
      %v827 = vpop.permute.xlu0 %826
      %828 = vrot.lane.b32.xlu0 %v767, 124
      %v829 = vpop.permute.xlu0 %828
      %v833 = vsub.f32 %v765, %v825
      %v834 = vsub.f32 %v766, %v827
      %v835 = vsub.f32 %v767, %v829
      %v839 = vrot.slane %v777, 4
      %v840 = vrot.slane %v778, 4
      %v841 = vsel %vm730, %v839, %v840
      %v842 = vrot.slane %v779, 4
      %v843 = vsel %vm730, %v840, %v842
      %v847 = vsub.f32 %v777, %v841
      %v848 = vsub.f32 %v778, %v843
      %v849 = vsub.f32 %v779, %v842
      %v850 = vmul.f32 %v833, 0.125
      %v851 = vmul.f32 %v834, 0.125
      %v852 = vmul.f32 %v835, 0.125
      %v853 = vand.u32 2147483647, %v850
      %v854 = vand.u32 2147483647, %v851
      %v855 = vand.u32 2147483647, %v852
      %v856 = vmul.f32 %v847, 0.125
      %v857 = vmul.f32 %v848, 0.125
      %v858 = vmul.f32 %v849, 0.125
      %v859 = vand.u32 2147483647, %v856
      %v860 = vand.u32 2147483647, %v857
      %v861 = vand.u32 2147483647, %v858
      %v862 = vmax.f32 %v812, %v853
      %v863 = vmax.f32 %v813, %v854
      %v864 = vmax.f32 %v814, %v855
      %v865 = vmax.f32 %v818, %v859
      %v866 = vmax.f32 %v819, %v860
      %v867 = vmax.f32 %v820, %v861
      %v868 = vlaneseq
      %v869 = vshrl.u32 %v868, 7
      %v870 = vadd.s32 %v869, 8
      %v871 = vstv %s66
      %v872 = vadd.s32 %v869, %v871
      %v873 = vadd.s32 %v870, %v871
      %vm874 = vcmp.lt.s32.totalorder %v872, 16
      %vm875 = vcmp.lt.s32.totalorder %v873, 16
      %v879 = vrot.slane %v862, 1
      %v880 = vrot.slane %v863, 1
      %v881 = vsel %vm324, %v879, %v880
      %v882 = vrot.slane %v864, 1
      %v883 = vsel %vm324, %v880, %v882
      %884 = vrot.lane.b32.xlu0 %v881, 127
      %v885 = vpop.permute.xlu0 %884
      %886 = vrot.lane.b32.xlu0 %v883, 127
      %v887 = vpop.permute.xlu0 %886
      %v890 = vsel %vm874, %v885, 0.0
      %v891 = vsel %vm875, %v887, 0.0
      %v895 = vrot.slane %v865, 1
      %v896 = vrot.slane %v866, 1
      %v897 = vsel %vm324, %v895, %v896
      %v898 = vrot.slane %v867, 1
      %v899 = vsel %vm324, %v896, %v898
      %900 = vrot.lane.b32.xlu0 %v897, 127
      %v901 = vpop.permute.xlu0 %900
      %902 = vrot.lane.b32.xlu0 %v899, 127
      %v903 = vpop.permute.xlu0 %902
      %v906 = vsel %vm874, %v901, 0.0
      %v907 = vsel %vm875, %v903, 0.0
      %v908 = vadd.f32 %v890, %v906
      %v909 = vadd.f32 %v891, %v907
      %v910 = vmul.f32 %v908, 0.5
      %v911 = vmul.f32 %v909, 0.5
      %v912 = vld [vmem:[#allocation2 + $0x4] sm:$0xff]
      %v913 = vld [vmem:[#allocation2 + $0xc] sm:$0xff]
      %v914 = vld [vmem:[#allocation2 + $0x14] sm:$0x1]
      %v915 = vld [vmem:[%s200 + $0x4] sm:$0xff]
      %v916 = vld [vmem:[%s200 + $0xc] sm:$0xff]
      %v917 = vld [vmem:[%s200 + $0x14] sm:$0x1]
      %v918 = vld [vmem:[%s210 + $0x4] sm:$0xff]
      %v919 = vld [vmem:[%s210 + $0xc] sm:$0xff]
      %v920 = vld [vmem:[%s210 + $0x14] sm:$0x1]
      %v921 = vmul.f32 %v912, 0.5959
      %v922 = vmul.f32 %v913, 0.5959
      %v923 = vmul.f32 %v914, 0.5959
      %v924 = vmul.f32 %v915, -0.2746
      %v925 = vmul.f32 %v916, -0.2746
      %v926 = vmul.f32 %v917, -0.2746
      %v927 = vadd.f32 %v921, %v924
      %v928 = vadd.f32 %v922, %v925
      %v929 = vadd.f32 %v923, %v926
      %v930 = vmul.f32 %v918, -0.3213
      %v931 = vmul.f32 %v919, -0.3213
      %v932 = vmul.f32 %v920, -0.3213
      %v933 = vadd.f32 %v927, %v930
      %v934 = vadd.f32 %v928, %v931
      %v935 = vadd.f32 %v929, %v932
      %v939 = vrot.slane %v933, 1
      %v940 = vrot.slane %v934, 1
      %v941 = vsel %vm324, %v939, %v940
      %v942 = vrot.slane %v935, 1
      %v943 = vsel %vm324, %v940, %v942
      %v946 = vadd.f32 %v933, %v941
      %v947 = vadd.f32 %v934, %v943
      %950 = vrot.lane.b32.xlu0 %v946, 127
      %v951 = vpop.permute.xlu0 %950
      %952 = vrot.lane.b32.xlu0 %v947, 127
      %v953 = vpop.permute.xlu0 %952
      %v956 = vadd.f32 %v946, %v951
      %v957 = vadd.f32 %v947, %v953
      %v958 = vmul.f32 %v956, 0.25
      %v959 = vmul.f32 %v957, 0.25
      %v960 = vand.u32 2147483647, %v958
      %v961 = vand.u32 2147483647, %v959
      %v962 = vld [vmem:[#allocation3 + $0x4] sm:$0xff]
      %v963 = vld [vmem:[#allocation3 + $0xc] sm:$0xff]
      %v964 = vld [vmem:[#allocation3 + $0x14] sm:$0x1]
      %v965 = vld [vmem:[%s229 + $0x4] sm:$0xff]
      %v966 = vld [vmem:[%s229 + $0xc] sm:$0xff]
      %v967 = vld [vmem:[%s229 + $0x14] sm:$0x1]
      %v968 = vld [vmem:[%s239 + $0x4] sm:$0xff]
      %v969 = vld [vmem:[%s239 + $0xc] sm:$0xff]
      %v970 = vld [vmem:[%s239 + $0x14] sm:$0x1]
      %v971 = vmul.f32 %v962, 0.5959
      %v972 = vmul.f32 %v963, 0.5959
      %v973 = vmul.f32 %v964, 0.5959
      %v974 = vmul.f32 %v965, -0.2746
      %v975 = vmul.f32 %v966, -0.2746
      %v976 = vmul.f32 %v967, -0.2746
      %v977 = vadd.f32 %v971, %v974
      %v978 = vadd.f32 %v972, %v975
      %v979 = vadd.f32 %v973, %v976
      %v980 = vmul.f32 %v968, -0.3213
      %v981 = vmul.f32 %v969, -0.3213
      %v982 = vmul.f32 %v970, -0.3213
      %v983 = vadd.f32 %v977, %v980
      %v984 = vadd.f32 %v978, %v981
      %v985 = vadd.f32 %v979, %v982
      %v989 = vrot.slane %v983, 1
      %v990 = vrot.slane %v984, 1
      %v991 = vsel %vm324, %v989, %v990
      %v992 = vrot.slane %v985, 1
      %v993 = vsel %vm324, %v990, %v992
      %v996 = vadd.f32 %v983, %v991
      %v997 = vadd.f32 %v984, %v993
      %1000 = vrot.lane.b32.xlu0 %v996, 127
      %v1001 = vpop.permute.xlu0 %1000
      %1002 = vrot.lane.b32.xlu0 %v997, 127
      %v1003 = vpop.permute.xlu0 %1002
      %v1006 = vadd.f32 %v996, %v1001
      %v1007 = vadd.f32 %v997, %v1003
      %v1008 = vmul.f32 %v1006, 0.25
      %v1009 = vmul.f32 %v1007, 0.25
      %v1010 = vand.u32 2147483647, %v1008
      %v1011 = vand.u32 2147483647, %v1009
      %v1012 = vmul.f32 %v960, 2.0
      %v1013 = vmul.f32 %v961, 2.0
      %v1014 = vmul.f32 %v1012, %v1010
      %v1015 = vmul.f32 %v1013, %v1011
      %v1016 = vadd.f32 %v1014, 0.00046136102
      %v1017 = vadd.f32 %v1015, 0.00046136102
      %v1018 = vmul.f32 %v960, %v960
      %v1019 = vmul.f32 %v961, %v961
      %v1020 = vmul.f32 %v1010, %v1010
      %v1021 = vmul.f32 %v1011, %v1011
      %v1022 = vadd.f32 %v1018, %v1020
      %v1023 = vadd.f32 %v1019, %v1021
      %v1024 = vadd.f32 %v1022, 0.00046136102
      %v1025 = vadd.f32 %v1023, 0.00046136102
      %v1026 = vrcp.pop %v1024
      %v1027 = vrcp.pop %v1025
      %v1028 = vmul.f32 %v1024, %v1026
      %v1029 = vmul.f32 %v1025, %v1027
      %v1030 = vsub.f32 2.0, %v1028
      %v1031 = vsub.f32 2.0, %v1029
      %v1032 = vmul.f32 %v1026, %v1030
      %v1033 = vmul.f32 %v1027, %v1031
      %v1034 = vmul.f32 %v1016, %v1032
      %v1035 = vmul.f32 %v1017, %v1033
      %v1036 = vmul.f32 %v912, 0.2115
      %v1037 = vmul.f32 %v913, 0.2115
      %v1038 = vmul.f32 %v914, 0.2115
      %v1039 = vmul.f32 %v915, -0.5227
      %v1040 = vmul.f32 %v916, -0.5227
      %v1041 = vmul.f32 %v917, -0.5227
      %v1042 = vadd.f32 %v1036, %v1039
      %v1043 = vadd.f32 %v1037, %v1040
      %v1044 = vadd.f32 %v1038, %v1041
      %v1045 = vmul.f32 %v918, 0.3112
      %v1046 = vmul.f32 %v919, 0.3112
      %v1047 = vmul.f32 %v920, 0.3112
      %v1048 = vadd.f32 %v1042, %v1045
      %v1049 = vadd.f32 %v1043, %v1046
      %v1050 = vadd.f32 %v1044, %v1047
      %v1054 = vrot.slane %v1048, 1
      %v1055 = vrot.slane %v1049, 1
      %v1056 = vsel %vm324, %v1054, %v1055
      %v1057 = vrot.slane %v1050, 1
      %v1058 = vsel %vm324, %v1055, %v1057
      %v1061 = vadd.f32 %v1048, %v1056
      %v1062 = vadd.f32 %v1049, %v1058
      %1065 = vrot.lane.b32.xlu0 %v1061, 127
      %v1066 = vpop.permute.xlu0 %1065
      %1067 = vrot.lane.b32.xlu0 %v1062, 127
      %v1068 = vpop.permute.xlu0 %1067
      %v1071 = vadd.f32 %v1061, %v1066
      %v1072 = vadd.f32 %v1062, %v1068
      %v1073 = vmul.f32 %v1071, 0.25
      %v1074 = vmul.f32 %v1072, 0.25
      %v1075 = vand.u32 2147483647, %v1073
      %v1076 = vand.u32 2147483647, %v1074
      %v1077 = vmul.f32 %v962, 0.2115
      %v1078 = vmul.f32 %v963, 0.2115
      %v1079 = vmul.f32 %v964, 0.2115
      %v1080 = vmul.f32 %v965, -0.5227
      %v1081 = vmul.f32 %v966, -0.5227
      %v1082 = vmul.f32 %v967, -0.5227
      %v1083 = vadd.f32 %v1077, %v1080
      %v1084 = vadd.f32 %v1078, %v1081
      %v1085 = vadd.f32 %v1079, %v1082
      %v1086 = vmul.f32 %v968, 0.3112
      %v1087 = vmul.f32 %v969, 0.3112
      %v1088 = vmul.f32 %v970, 0.3112
      %v1089 = vadd.f32 %v1083, %v1086
      %v1090 = vadd.f32 %v1084, %v1087
      %v1091 = vadd.f32 %v1085, %v1088
      %v1095 = vrot.slane %v1089, 1
      %v1096 = vrot.slane %v1090, 1
      %v1097 = vsel %vm324, %v1095, %v1096
      %v1098 = vrot.slane %v1091, 1
      %v1099 = vsel %vm324, %v1096, %v1098
      %v1102 = vadd.f32 %v1089, %v1097
      %v1103 = vadd.f32 %v1090, %v1099
      %1106 = vrot.lane.b32.xlu0 %v1102, 127
      %v1107 = vpop.permute.xlu0 %1106
      %1108 = vrot.lane.b32.xlu0 %v1103, 127
      %v1109 = vpop.permute.xlu0 %1108
      %v1112 = vadd.f32 %v1102, %v1107
      %v1113 = vadd.f32 %v1103, %v1109
      %v1114 = vmul.f32 %v1112, 0.25
      %v1115 = vmul.f32 %v1113, 0.25
      %v1116 = vand.u32 2147483647, %v1114
      %v1117 = vand.u32 2147483647, %v1115
      %v1118 = vmul.f32 %v1075, 2.0
      %v1119 = vmul.f32 %v1076, 2.0
      %v1120 = vmul.f32 %v1118, %v1116
      %v1121 = vmul.f32 %v1119, %v1117
      %v1122 = vadd.f32 %v1120, 0.00046136102
      %v1123 = vadd.f32 %v1121, 0.00046136102
      %v1124 = vmul.f32 %v1075, %v1075
      %v1125 = vmul.f32 %v1076, %v1076
      %v1126 = vmul.f32 %v1116, %v1116
      %v1127 = vmul.f32 %v1117, %v1117
      %v1128 = vadd.f32 %v1124, %v1126
      %v1129 = vadd.f32 %v1125, %v1127
      %v1130 = vadd.f32 %v1128, 0.00046136102
      %v1131 = vadd.f32 %v1129, 0.00046136102
      %v1132 = vrcp.pop %v1130
      %v1133 = vrcp.pop %v1131
      %v1134 = vmul.f32 %v1130, %v1132
      %v1135 = vmul.f32 %v1131, %v1133
      %v1136 = vsub.f32 2.0, %v1134
      %v1137 = vsub.f32 2.0, %v1135
      %v1138 = vmul.f32 %v1132, %v1136
      %v1139 = vmul.f32 %v1133, %v1137
      %v1140 = vmul.f32 %v1122, %v1138
      %v1141 = vmul.f32 %v1123, %v1139
      %v1142 = vadd.f32 %v1034, %v1140
      %v1143 = vadd.f32 %v1035, %v1141
      %v1144 = vmul.f32 %v1142, 0.5
      %v1145 = vmul.f32 %v1143, 0.5
      %v1146 = vmul.f32 %v659, 4.2
      %v1147 = vmul.f32 %v660, 4.2
      %v1148 = vmul.f32 %v661, 4.2
      %v1149 = vmul.f32 %v1146, 0.5
      %v1150 = vmul.f32 %v1147, 0.5
      %v1151 = vmul.f32 %v1148, 0.5
      %v1152 = vtanh.pop %v1149
      %v1153 = vtanh.pop %v1150
      %v1154 = vtanh.pop %v1151
      %v1155 = vadd.f32 %v1152, 1.0
      %v1156 = vadd.f32 %v1153, 1.0
      %v1157 = vadd.f32 %v1154, 1.0
      %v1158 = vmul.f32 %v1155, 0.5
      %v1159 = vmul.f32 %v1156, 0.5
      %v1160 = vmul.f32 %v1157, 0.5
      %v1161 = vmul.f32 %v718, 4.2
      %v1162 = vmul.f32 %v719, 4.2
      %v1163 = vmul.f32 %v720, 4.2
      %v1164 = vmul.f32 %v1161, 0.5
      %v1165 = vmul.f32 %v1162, 0.5
      %v1166 = vmul.f32 %v1163, 0.5
      %v1167 = vtanh.pop %v1164
      %v1168 = vtanh.pop %v1165
      %v1169 = vtanh.pop %v1166
      %v1170 = vadd.f32 %v1167, 1.0
      %v1171 = vadd.f32 %v1168, 1.0
      %v1172 = vadd.f32 %v1169, 1.0
      %v1173 = vmul.f32 %v1170, 0.5
      %v1174 = vmul.f32 %v1171, 0.5
      %v1175 = vmul.f32 %v1172, 0.5
      %v1176 = vmul.f32 %v1144, 4.2
      %v1177 = vmul.f32 %v1145, 4.2
      %v1178 = vmul.f32 %v1176, 0.5
      %v1179 = vmul.f32 %v1177, 0.5
      %v1180 = vtanh.pop %v1178
      %v1181 = vtanh.pop %v1179
      %v1182 = vadd.f32 %v1180, 1.0
      %v1183 = vadd.f32 %v1181, 1.0
      %v1184 = vmul.f32 %v1182, 0.5
      %v1185 = vmul.f32 %v1183, 0.5
      %v1188 = vrot.slane %v890, 4
      %v1189 = vrot.slane %v891, 4
      %v1190 = vsel %vm730, %v1188, %v1189
      %1191 = vrot.lane.b32.xlu0 %v1188, 4
      %v1192 = vpop.permute.xlu0 %1191
      %1193 = vrot.lane.b32.xlu0 %v1190, 4
      %v1194 = vpop.permute.xlu0 %1193
      %1195 = vrot.lane.b32.xlu0 %v1189, 4
      %v1196 = vpop.permute.xlu0 %1195
      %v1200 = vmul.f32 %v1158, %v1192
      %v1201 = vmul.f32 %v1159, %v1194
      %v1202 = vmul.f32 %v1160, %v1196
      %v1205 = vrot.slane %v906, 4
      %v1206 = vrot.slane %v907, 4
      %v1207 = vsel %vm730, %v1205, %v1206
      %1208 = vrot.lane.b32.xlu0 %v1205, 4
      %v1209 = vpop.permute.xlu0 %1208
      %1210 = vrot.lane.b32.xlu0 %v1207, 4
      %v1211 = vpop.permute.xlu0 %1210
      %1212 = vrot.lane.b32.xlu0 %v1206, 4
      %v1213 = vpop.permute.xlu0 %1212
      %v1217 = vmul.f32 %v1173, %v1209
      %v1218 = vmul.f32 %v1174, %v1211
      %v1219 = vmul.f32 %v1175, %v1213
      %v1220 = vadd.f32 %v1200, %v1217
      %v1221 = vadd.f32 %v1201, %v1218
      %v1222 = vadd.f32 %v1202, %v1219
      %1225 = vrot.lane.b32.xlu0 %v910, 4
      %v1226 = vpop.permute.xlu0 %1225
      %1227 = vrot.lane.b32.xlu0 %v911, 4
      %v1228 = vpop.permute.xlu0 %1227
      %v1231 = vmul.f32 %v1184, %v1226
      %v1232 = vmul.f32 %v1185, %v1228
      %v1235 = vrot.slane %v1231, 4
      %v1236 = vrot.slane %v1232, 4
      %v1237 = vsel %vm730, %v1235, %v1236
      %v1241 = vadd.f32 %v1220, %v1235
      %v1242 = vadd.f32 %v1221, %v1237
      %v1243 = vadd.f32 %v1222, %v1236
      %v1247 = vrot.slane %v1241, 4
      %v1248 = vrot.slane %v1242, 4
      %v1249 = vsel %vm730, %v1247, %v1248
      %v1250 = vrot.slane %v1243, 4
      %v1251 = vsel %vm730, %v1248, %v1250
      %1252 = vrot.lane.b32.xlu0 %v1249, 124
      %v1253 = vpop.permute.xlu0 %1252
      %1254 = vrot.lane.b32.xlu0 %v1251, 124
      %v1255 = vpop.permute.xlu0 %1254
      %vm1258 = vcmask 130048
      %v1259 = vsel %vm1258, %v1253, 0.0
      %v1260 = vsel %vm1258, %v1255, 0.0
      %v1261 = vadd.f32 %v1259, %v1260
      %1262 = vadd.xlane.f32.xlu0 %v1261
      %v1263 = vpop.xlane.xlu0 %1262
      %v1264 = vrot.slane %v1263, 4
      %v1265 = vadd.f32 %v1263, %v1264
      %v1266 = vrot.slane %v1265, 2
      %v1267 = vadd.f32 %v1265, %v1266
      %v1268 = vrot.slane %v1267, 1
      %v1269 = vadd.f32 %v1267, %v1268
      %s1270 = vtos %v1269
      %v1271 = vadd.f32 %v908, %v910
      %v1272 = vadd.f32 %v909, %v911
      %v1273 = vsel %vm1258, %v1271, 0.0
      %v1274 = vsel %vm1258, %v1272, 0.0
      %v1275 = vadd.f32 %v1273, %v1274
      %1276 = vadd.xlane.f32.xlu0 %v1275
      %v1277 = vpop.xlane.xlu0 %1276
      %v1278 = vrot.slane %v1277, 4
      %v1279 = vadd.f32 %v1277, %v1278
      %v1280 = vrot.slane %v1279, 2
      %v1281 = vadd.f32 %v1279, %v1280
      %v1282 = vrot.slane %v1281, 1
      %v1283 = vadd.f32 %v1281, %v1282
      %s1284 = vtos %v1283
      %v1285 = vstv %s1270
      %1286 = vst [vmem:[%s65] sm:$0x1] %v1285
      %v1287 = vstv %s1284
      %1288 = vst [vmem:[%s65 + $0x1] sm:$0x1] %v1287
      %p1289 = scmp.lt.s32.totalorder %s14, 1
      %s1290 = scalar_select %p1289, %s14, 1
      %p1291 = scmp.lt.s32.totalorder %s15, 0
      %s1292 = scalar_select %p1291, %s15, 0
      %s1293 = sadd.s32 %s1292, %s1290
      %s1294 = smul.addr %s1293, 2
      %s1295 = scalar_lea.vmem %s2, %s1294
      // Predicated region
      $region81: #{haarpsi_pallas.1} parent=11 // pred_check
        %p1296 = pneg %p35
      $region82: #{haarpsi_pallas.1} parent=11 // pred_check_branch
        %1298 = sbr.rel (%p1296) target = $region84
      $region83: #{haarpsi_pallas.1} parent=11 // pred_region
        _
      $region84: #{haarpsi_pallas.1} parent=11 // pred_fallthru
        _
    $region12: #{haarpsi_pallas.1} parent=5 // pred_fallthru
      _
    %p1299 = scmp.le.s32.totalorder 1, %s8
    // Predicated region
    $region85: #{haarpsi_pallas.1} parent=5 // pred_check
      %p1300 = pneg %p1299
    $region86: #{haarpsi_pallas.1} parent=5 // pred_check_branch
      %1302 = sbr.rel (%p1300) target = $region88
    $region87: #{haarpsi_pallas.1} parent=5 // pred_region
      %s1303 = ssub.s32 %s8, 1
      // Predicated region
      $region89: #{haarpsi_pallas.1} parent=87 // pred_check
        %p1304 = pneg %p41
      $region90: #{haarpsi_pallas.1} parent=87 // pred_check_branch
        %1306 = sbr.rel (%p1304) target = $region92
      $region91: #{haarpsi_pallas.1} parent=87 // pred_region
        %p1307 = scmp.lt.s32.totalorder %s16, 1
        %s1308 = scalar_select %p1307, %s16, 1
        %p1309 = scmp.lt.s32.totalorder %s17, 0
        %s1310 = scalar_select %p1309, %s17, 0
        %s1311 = sadd.s32 %s1310, %s1308
        %s1312 = smul.addr %s1311, 2
        %s1313 = scalar_lea.vmem %s2, %s1312
      $region92: #{haarpsi_pallas.1} parent=87 // pred_fallthru
        _
    $region88: #{haarpsi_pallas.1} parent=5 // pred_fallthru
      _
  $region6: #{haarpsi_pallas.1} parent=0 // loop_footer
    %s12 = sadd.s32 1, %s8
  $region7: #{haarpsi_pallas.1} parent=0 // loop_footer_branch
    %7 = sbr.rel target = $region3
  $region8: #{haarpsi_pallas.1} parent=0 // loop_exit
    _
  %1314 = vsyncmov [#allocation6]
  %s1315 = vpop.sfrf %1314
  %p1316 = scmp.eq.s32.totalorder %s1315, 0
  %p1317 = pneg %p1316
  %1319 = shalt.err (%p1317)
  %s1320 = scalar_lea.sflag [#allocation6], 1
  %1321 = vsyncmov %s1320
  %s1322 = vpop.sfrf %1321
  %p1323 = scmp.eq.s32.totalorder %s1322, 0
  %p1324 = pneg %p1323
  %1326 = shalt.err (%p1324)

</llo_original>
